<compile_context>
chip_gen: v6e
topology: v6e:2x2x1
jax: 0.10.0
libtpu: 0.0.40
codegen_flags: <defaults>
</compile_context>

<pallas_src>
import numpy as np

import jax
import jax.numpy as jnp
from jax.experimental import pallas as pl
from jax.experimental.pallas import tpu as pltpu

# ------------------------- small model dimensions -------------------------
B = 2          # batch
N_MEL = 8      # n_mel_channels * n_frames_per_step  (decoder_input dim)
PRENET = 32    # prenet_dim
ENC = 16       # encoder_embedding_dim
ATT_RNN = 32   # attention_rnn_dim
DEC_RNN = 32   # decoder_rnn_dim
ATT_DIM = 16   # attention_dim
LOC_F = 4      # attention_location_n_filters
LOC_K = 5      # attention_location_kernel_size (odd)
T = 8          # encoder / memory time steps
STEPS = 4      # decode steps run inside ONE pallas_call

_F32 = jnp.float32
NEG = -1e30                      # python literal -> no captured constant
PAD_K = (LOC_K - 1) // 2


def _r8(x):
    return ((x + 7) // 8) * 8


def _r128(x):
    return ((x + 127) // 128) * 128


# ---------------- packed weight slab layout: [W_ROWS, 128] f32 -------------
# Rows rounded up to multiples of 8; all weights stored pre-transposed
# ([in, out]); LSTM W_ih|W_hh fused, biases summed; gate head folded into the
# projection as an extra output column.
_W_SHAPES = [
    ("pre_w1", (N_MEL, PRENET)),
    ("pre_w2", (PRENET, PRENET)),
    ("arnn_w", (PRENET + ENC + ATT_RNN, 4 * ATT_RNN)),   # fused [W_ih.T ; W_hh.T]
    ("arnn_b", (1, 4 * ATT_RNN)),                        # b_ih + b_hh
    ("q_w",    (ATT_RNN, ATT_DIM)),
    ("loc_w",  (2 * LOC_K, ATT_DIM)),                    # fused conv1d*dense (per-tap rows)
    ("v_w",    (1, ATT_DIM)),
    ("drnn_w", (ATT_RNN + ENC + DEC_RNN, 4 * DEC_RNN)),
    ("drnn_b", (1, 4 * DEC_RNN)),
    ("proj_w", (DEC_RNN + ENC, N_MEL + 1)),              # gate column folded in
    ("proj_b", (1, N_MEL + 1)),                          # gate bias folded in
]
W_LAYOUT = {}
_row_off = 0
for _name, (_rr, _cc) in _W_SHAPES:
    W_LAYOUT[_name] = (_row_off, _rr, _cc)
    _row_off += _r8(_rr)
W_ROWS = _r8(_row_off)
W_COLS = 128

# ------- packed init-state slab layout: [B, STATE_W] f32 (resident) --------
# att_ctx is placed immediately before att_h so the scratch carry can load /
# store them as one contiguous [ctx | att_h] piece (2-piece attention-LSTM
# input concat).
_S_FIELDS = [
    ("dec_in", N_MEL), ("att_ctx", ENC), ("att_h", ATT_RNN), ("att_c", ATT_RNN),
    ("dec_h", DEC_RNN), ("dec_c", DEC_RNN), ("att_w", T), ("att_w_cum", T),
    ("mask", T),
]
S_OFF = {}
_soff = 0
for _name, _w in _S_FIELDS:
    S_OFF[_name] = (_soff, _w)
    _soff += _w
STATE_USED = _soff
STATE_W = _r128(STATE_USED)

# -------------- per-step packed output layout: [STEPS, B, OUT_W] -----------
_O_FIELDS = [
    ("dec_out", N_MEL), ("gate", 1), ("att_h", ATT_RNN), ("att_c", ATT_RNN),
    ("dec_h", DEC_RNN), ("dec_c", DEC_RNN), ("att_w", T), ("att_w_cum", T),
    ("att_ctx", ENC),
]
O_OFF = {}
_ooff = 0
for _name, _w in _O_FIELDS:
    O_OFF[_name] = (_ooff, _w)
    _ooff += _w
OUT_USED = _ooff
OUT_W = _r128(OUT_USED)


# =============================== kernel ====================================
def decoder_loop_kernel(state_ref, memT_ref, pmem_ref, pmask_ref, w_ref, out_ref,
                        dec_in_ref, ca_ref, att_c_ref, dec_h_ref, dec_c_ref,
                        aw_ref, awc_ref):
    def st(name):
        off, w = S_OFF[name]
        return state_ref[:, off:off + w]

    def wt(name):
        off, r, c = W_LAYOUT[name]
        return w_ref[off:off + r, 0:c]

    # ---- step 0: load the carried state from the resident init slab -------
    @pl.when(pl.program_id(0) == 0)
    def _():
        dec_in_ref[...] = st("dec_in")
        off_ca = S_OFF["att_ctx"][0]
        ca_ref[...] = state_ref[:, off_ca:off_ca + ENC + ATT_RNN]   # [ctx | att_h]
        att_c_ref[...] = st("att_c")
        dec_h_ref[...] = st("dec_h")
        dec_c_ref[...] = st("dec_c")
        aw_ref[...] = st("att_w")
        awc_ref[...] = st("att_w_cum")

    x = dec_in_ref[...]
    ca = ca_ref[...]                       # [B, ENC+ATT_RNN] = [ctx | att_h]
    att_c0 = att_c_ref[...]
    dec_h0 = dec_h_ref[...]
    dec_c0 = dec_c_ref[...]
    aw0 = aw_ref[...]
    awc0 = awc_ref[...]
    mask = st("mask")
    pm = pmask_ref[0]                      # [B, 2*PRENET], this step's dropout masks

    # ---------------- prenet.infer: relu -> bernoulli(0.5) mask * 2 --------
    h = jnp.maximum(jnp.dot(x, wt("pre_w1"), preferred_element_type=_F32), 0.0)
    h = h * pm[:, 0:PRENET] * 2.0
    h = jnp.maximum(jnp.dot(h, wt("pre_w2"), preferred_element_type=_F32), 0.0)
    h = h * pm[:, PRENET:2 * PRENET] * 2.0

    # ---------------- attention LSTM (single fused matmul, 2-piece concat) --
    arnn_in = jnp.concatenate([h, ca], axis=1)                      # [B, 80]
    gates = jnp.dot(arnn_in, wt("arnn_w"),
                    preferred_element_type=_F32) + wt("arnn_b")     # [B, 128]
    sg = jax.nn.sigmoid(gates)                                      # full-vreg EUP
    tg = jnp.tanh(gates)
    Ha = ATT_RNN
    att_c = sg[:, Ha:2 * Ha] * att_c0 + sg[:, 0:Ha] * tg[:, 2 * Ha:3 * Ha]
    att_h = sg[:, 3 * Ha:4 * Ha] * jnp.tanh(att_c)

    # ---------------- location-sensitive attention -------------------------
    pq = jnp.dot(att_h, wt("q_w"), preferred_element_type=_F32)     # [B, A]

    # in-kernel "im2col": static lane shifts of the carried attention weights,
    # fused Conv1d*location_dense applied as 2K per-tap outer products.
    loc_w = wt("loc_w")                                             # [2K, A]

    def shifted(sig, s):
        # out[:, t] = sig[:, t + s], zero outside [0, T)
        if s == 0:
            return sig
        if s > 0:
            return jnp.concatenate([sig[:, s:], jnp.zeros((B, s), _F32)], axis=1)
        return jnp.concatenate([jnp.zeros((B, -s), _F32), sig[:, :T + s]], axis=1)

    ploc = jnp.zeros((B, T, ATT_DIM), _F32)
    for k in range(LOC_K):
        s = k - PAD_K
        ploc = ploc + shifted(aw0, s)[:, :, None] * loc_w[k:k + 1, :][None, :, :]
        ploc = ploc + shifted(awc0, s)[:, :, None] * \
            loc_w[LOC_K + k:LOC_K + k + 1, :][None, :, :]

    energy_in = jnp.tanh(pq[:, None, :] + ploc + pmem_ref[...])     # [B, T, A]
    v = wt("v_w")                                                   # [1, A]
    energies = jnp.sum(energy_in * v[None, :, :], axis=-1)          # [B, T] (VPU+XLU)

    # masked_fill(-inf) + softmax over time (all in f32)
    energies = jnp.where(mask > 0.5, jnp.full_like(energies, NEG), energies)
    e_max = jnp.max(energies, axis=1, keepdims=True)
    e = jnp.exp(energies - e_max)
    att_w = e / jnp.sum(e, axis=1, keepdims=True)                   # [B, T]
    att_w_cum = awc0 + att_w

    # attention context: memory resident as [B, ENC, T]; lane-major reduce.
    ctx = jnp.sum(att_w[:, None, :] * memT_ref[...], axis=-1)       # [B, ENC]

    # ---------------- decoder LSTM (single fused matmul) -------------------
    drnn_in = jnp.concatenate([att_h, ctx, dec_h0], axis=1)         # [B, 80]
    gates2 = jnp.dot(drnn_in, wt("drnn_w"),
                     preferred_element_type=_F32) + wt("drnn_b")
    sg2 = jax.nn.sigmoid(gates2)
    tg2 = jnp.tanh(gates2)
    Hd = DEC_RNN
    dec_c = sg2[:, Hd:2 * Hd] * dec_c0 + sg2[:, 0:Hd] * tg2[:, 2 * Hd:3 * Hd]
    dec_h = sg2[:, 3 * Hd:4 * Hd] * jnp.tanh(dec_c)

    # ---------------- projection (gate head folded into the same matmul) ---
    hid_ctx = jnp.concatenate([dec_h, ctx], axis=1)                 # [B, 48]
    proj = jnp.dot(hid_ctx, wt("proj_w"),
                   preferred_element_type=_F32) + wt("proj_b")      # [B, 9]

    # ---------------- write back the carried state -------------------------
    dec_in_ref[...] = proj[:, 0:N_MEL]          # autoregressive feedback
    ca_ref[...] = jnp.concatenate([ctx, att_h], axis=1)
    att_c_ref[...] = att_c
    dec_h_ref[...] = dec_h
    dec_c_ref[...] = dec_c
    aw_ref[...] = att_w
    awc_ref[...] = att_w_cum

    # ---------------- single lane-dense packed per-step store --------------
    pad = jnp.zeros((B, OUT_W - OUT_USED), _F32)
    out_ref[0] = jnp.concatenate(
        [proj, att_h, att_c, dec_h, dec_c, att_w, att_w_cum, ctx, pad], axis=1)


# ============================ host-side packing =============================
def pack_params(params):
    """One-time: pack all (pre-transposed / fused) weights into a [W_ROWS,128] slab."""
    w = jnp.zeros((W_ROWS, W_COLS), _F32)

    def put(w, name, mat):
        off, _, _ = W_LAYOUT[name]
        r, c = mat.shape
        return w.at[off:off + r, 0:c].set(mat.astype(_F32))

    w = put(w, "pre_w1", params["pre_w1"].T)
    w = put(w, "pre_w2", params["pre_w2"].T)
    w = put(w, "arnn_w",
            jnp.concatenate([params["arnn_wih"].T, params["arnn_whh"].T], axis=0))
    w = put(w, "arnn_b", params["arnn_bih"] + params["arnn_bhh"])
    w = put(w, "q_w", params["q_w"].T)
    # fuse Conv1d (no bias) with location_dense (no bias):
    # fused[c*K + k, a] = sum_f dense[a, f] * conv[f, c, k]
    fused_loc = jnp.einsum("af,fck->cka",
                           params["loc_dense_w"], params["loc_conv_w"])
    w = put(w, "loc_w", fused_loc.reshape(2 * LOC_K, ATT_DIM))
    w = put(w, "v_w", params["v_w"])
    w = put(w, "drnn_w",
            jnp.concatenate([params["drnn_wih"].T, params["drnn_whh"].T], axis=0))
    w = put(w, "drnn_b", params["drnn_bih"] + params["drnn_bhh"])
    # gate head folded into the projection: extra output column + folded bias
    w = put(w, "proj_w",
            jnp.concatenate([params["proj_w"].T, params["gate_w"].T], axis=1))
    w = put(w, "proj_b",
            jnp.concatenate([params["proj_b"], params["gate_b"]], axis=1))
    return w


def pack_state(state):
    """Once per utterance: pack all [B, feat] init-state pieces into one slab."""
    fields = {
        "dec_in": state["decoder_input"],
        "att_ctx": state["attention_context"],
        "att_h": state["attention_hidden"],
        "att_c": state["attention_cell"],
        "dec_h": state["decoder_hidden"],
        "dec_c": state["decoder_cell"],
        "att_w": state["attention_weights"],
        "att_w_cum": state["attention_weights_cum"],
        "mask": state["mask"].astype(_F32),
    }
    pieces = [fields[n].astype(_F32) for n, _ in _S_FIELDS]
    pieces.append(jnp.zeros((B, STATE_W - STATE_USED), _F32))
    return jnp.concatenate(pieces, axis=1)


def decode_loop(w_slab, state, pmasks):
    """Run STEPS autoregressive decoder steps in ONE pallas_call.

    Step 0 is exactly DecoderIter.forward on the provided state; later steps
    feed the previous decoder_output back through the prenet.  pmasks is the
    per-step prenet dropout-mask tensor [STEPS, B, 2*PRENET] ({0,1} values).
    Returns 9 arrays of shape [STEPS, B, dim] (per-step module outputs).
    """
    state_slab = pack_state(state)                      # once per utterance
    memT = jnp.swapaxes(state["memory"], 1, 2)          # [B, ENC, T], once
    pmem = state["processed_memory"]                    # [B, T, ATT_DIM]

    grid_spec = pltpu.PrefetchScalarGridSpec(
        num_scalar_prefetch=0,
        grid=(STEPS,),
        in_specs=[
            pl.BlockSpec((B, STATE_W), lambda s: (0, 0)),            # resident
            pl.BlockSpec((B, ENC, T), lambda s: (0, 0, 0)),          # resident
            pl.BlockSpec((B, T, ATT_DIM), lambda s: (0, 0, 0)),      # resident
            pl.BlockSpec((1, B, 2 * PRENET), lambda s: (s, 0, 0)),   # per step
            pl.BlockSpec((W_ROWS, W_COLS), lambda s: (0, 0)),        # resident
        ],
        out_specs=pl.BlockSpec((1, B, OUT_W), lambda s: (s, 0, 0)),
        scratch_shapes=[
            pltpu.VMEM((B, N_MEL), _F32),           # decoder_input carry
            pltpu.VMEM((B, ENC + ATT_RNN), _F32),   # [att_ctx | att_h] carry
            pltpu.VMEM((B, ATT_RNN), _F32),         # attention_cell
            pltpu.VMEM((B, DEC_RNN), _F32),         # decoder_hidden
            pltpu.VMEM((B, DEC_RNN), _F32),         # decoder_cell
            pltpu.VMEM((B, T), _F32),               # attention_weights
            pltpu.VMEM((B, T), _F32),               # attention_weights_cum
        ],
    )
    out_slab = pl.pallas_call(
        decoder_loop_kernel,
        out_shape=jax.ShapeDtypeStruct((STEPS, B, OUT_W), _F32),
        grid_spec=grid_spec,
        compiler_params=pltpu.CompilerParams(
            dimension_semantics=("arbitrary",)),      # steps are sequential
    )(state_slab, memT, pmem, pmasks, w_slab)

    def out(name):
        off, w = O_OFF[name]
        return out_slab[:, :, off:off + w]

    return tuple(out(n) for n, _ in _O_FIELDS)


decode_loop_jit = jax.jit(decode_loop)


# ============================ pure-JAX reference ============================
def reference(params, state, pmask1, pmask2):
    """Single DecoderIter.forward step, unfused, straight from the PyTorch spec."""
    def lstm(x, h, c, wih, whh, bih, bhh):
        g = x @ wih.T + h @ whh.T + bih + bhh
        H = h.shape[-1]
        i = jax.nn.sigmoid(g[:, 0:H])
        f = jax.nn.sigmoid(g[:, H:2 * H])
        gg = jnp.tanh(g[:, 2 * H:3 * H])
        o = jax.nn.sigmoid(g[:, 3 * H:4 * H])
        c2 = f * c + i * gg
        return o * jnp.tanh(c2), c2

    x = state["decoder_input"]
    x1 = jnp.maximum(x @ params["pre_w1"].T, 0.0) * pmask1 * 2.0
    x1 = jnp.maximum(x1 @ params["pre_w2"].T, 0.0) * pmask2 * 2.0

    cell_in = jnp.concatenate([x1, state["attention_context"]], axis=-1)
    ah, ac = lstm(cell_in, state["attention_hidden"], state["attention_cell"],
                  params["arnn_wih"], params["arnn_whh"],
                  params["arnn_bih"], params["arnn_bhh"])

    aw, awc = state["attention_weights"], state["attention_weights_cum"]
    att_cat = jnp.stack([aw, awc], axis=1)                       # [B, 2, T]
    pad = (LOC_K - 1) // 2
    padded = jnp.pad(att_cat, ((0, 0), (0, 0), (pad, pad)))
    loc = jnp.zeros((B, T, LOC_F), _F32)
    for k in range(LOC_K):
        loc = loc + jnp.einsum("bct,fc->btf", padded[:, :, k:k + T],
                               params["loc_conv_w"][:, :, k])
    ploc = jnp.einsum("btf,af->bta", loc, params["loc_dense_w"])
    pq = ah @ params["q_w"].T
    ein = jnp.tanh(pq[:, None, :] + ploc + state["processed_memory"])
    energies = jnp.einsum("bta,ca->btc", ein, params["v_w"])[:, :, 0]
    energies = jnp.where(state["mask"] > 0.5, -1e30, energies)
    att_w = jax.nn.softmax(energies, axis=1)
    ctx = jnp.einsum("bt,bte->be", att_w, state["memory"])
    awc2 = awc + att_w

    dh, dc = lstm(jnp.concatenate([ah, ctx], axis=-1),
                  state["decoder_hidden"], state["decoder_cell"],
                  params["drnn_wih"], params["drnn_whh"],
                  params["drnn_bih"], params["drnn_bhh"])
    hc = jnp.concatenate([dh, ctx], axis=1)
    dec_out = hc @ params["proj_w"].T + params["proj_b"]
    gate = hc @ params["gate_w"].T + params["gate_b"]
    return (dec_out, gate, ah, ac, dh, dc, att_w, awc2, ctx)


# ================================= params ===================================
def make_params(key):
    ks = jax.random.split(key, 18)

    def init(k, shape, scale=0.1):
        return jax.random.normal(k, shape, dtype=_F32) * scale

    return dict(
        pre_w1=init(ks[0], (PRENET, N_MEL)),
        pre_w2=init(ks[1], (PRENET, PRENET)),
        arnn_wih=init(ks[2], (4 * ATT_RNN, PRENET + ENC)),
        arnn_whh=init(ks[3], (4 * ATT_RNN, ATT_RNN)),
        arnn_bih=init(ks[4], (1, 4 * ATT_RNN)),
        arnn_bhh=init(ks[5], (1, 4 * ATT_RNN)),
        q_w=init(ks[6], (ATT_DIM, ATT_RNN)),
        loc_conv_w=init(ks[7], (LOC_F, 2, LOC_K)),
        loc_dense_w=init(ks[8], (ATT_DIM, LOC_F)),
        v_w=init(ks[9], (1, ATT_DIM)),
        drnn_wih=init(ks[10], (4 * DEC_RNN, ATT_RNN + ENC)),
        drnn_whh=init(ks[11], (4 * DEC_RNN, DEC_RNN)),
        drnn_bih=init(ks[12], (1, 4 * DEC_RNN)),
        drnn_bhh=init(ks[13], (1, 4 * DEC_RNN)),
        proj_w=init(ks[14], (N_MEL, DEC_RNN + ENC)),
        proj_b=init(ks[15], (1, N_MEL)),
        gate_w=init(ks[16], (1, DEC_RNN + ENC)),
        gate_b=init(ks[17], (1, 1)),
    )


if __name__ == "__main__":
    key = jax.random.PRNGKey(0)
    k_param, k_in, k_mask = jax.random.split(key, 3)
    params = make_params(k_param)
    w_slab = pack_params(params)          # one-time weight packing

    kin = jax.random.split(k_in, 4)
    mask = jnp.zeros((B, T), dtype=_F32).at[1, T - 2:].set(1.0)  # 2 padded frames

    state = dict(
        decoder_input=jax.random.normal(kin[0], (B, N_MEL), dtype=_F32),
        attention_hidden=jnp.zeros((B, ATT_RNN), dtype=_F32),
        attention_cell=jnp.zeros((B, ATT_RNN), dtype=_F32),
        decoder_hidden=jnp.zeros((B, DEC_RNN), dtype=_F32),
        decoder_cell=jnp.zeros((B, DEC_RNN), dtype=_F32),
        attention_weights=jnp.zeros((B, T), dtype=_F32),
        attention_weights_cum=jnp.zeros((B, T), dtype=_F32),
        attention_context=jnp.zeros((B, ENC), dtype=_F32),
        memory=jax.random.normal(kin[1], (B, T, ENC), dtype=_F32),
        processed_memory=jax.random.normal(kin[2], (B, T, ATT_DIM), dtype=_F32),
        mask=mask,
    )

    # per-step prenet dropout masks: Bernoulli(0.5) per feature, shared over batch
    mkeys = jax.random.split(k_mask, STEPS * 2)
    pm_steps = []
    for s in range(STEPS):
        m1 = (jax.random.uniform(mkeys[2 * s], (1, PRENET)) <= 0.5).astype(_F32)
        m2 = (jax.random.uniform(mkeys[2 * s + 1], (1, PRENET)) <= 0.5).astype(_F32)
        pm_steps.append(jnp.concatenate(
            [jnp.broadcast_to(m1, (B, PRENET)),
             jnp.broadcast_to(m2, (B, PRENET))], axis=1))
    pmasks = jnp.stack(pm_steps, axis=0)                 # [STEPS, B, 2*PRENET]

    outs = decode_loop_jit(w_slab, state, pmasks)
    outs = jax.block_until_ready(outs)

    # correctness: iterate the pure-JAX single-step reference with the same
    # autoregressive feedback and compare every step's 9 module outputs.
    ref_state = dict(state)
    ref_steps = []
    for s in range(STEPS):
        r = reference(params, ref_state,
                      pmasks[s, :, :PRENET], pmasks[s, :, PRENET:])
        ref_steps.append(r)
        (dec_out, gate, ah, ac, dh, dc, aw, awc, ctx) = r
        ref_state = dict(ref_state, decoder_input=dec_out,
                         attention_hidden=ah, attention_cell=ac,
                         decoder_hidden=dh, decoder_cell=dc,
                         attention_weights=aw, attention_weights_cum=awc,
                         attention_context=ctx)
    refs = tuple(jnp.stack([ref_steps[s][i] for s in range(STEPS)], axis=0)
                 for i in range(len(_O_FIELDS)))

    for o, r in zip(outs, refs):
        np.testing.assert_allclose(np.asarray(o), np.asarray(r),
                                   rtol=2e-3, atol=2e-4)

    # sanity: attention weights are a softmax; padded positions exactly zero
    att_w_all = outs[6]                                  # [STEPS, B, T]
    assert all(bool(jnp.all(jnp.isfinite(o))) for o in outs)
    assert bool(jnp.allclose(jnp.sum(att_w_all, axis=-1), 1.0, atol=1e-5))
    assert bool(jnp.all(att_w_all[:, 1, T - 2:] == 0.0))

    print("KERNEL_OK")
</pallas_src>

<mosaic_0001>
module attributes {stable_mosaic.version = 11 : i64} {
  func.func @decoder_loop_kernel(%arg0: i32, %arg1: memref<2x256xf32, #tpu.memory_space<vmem>>, %arg2: memref<2x16x8xf32, #tpu.memory_space<vmem>>, %arg3: memref<2x8x16xf32, #tpu.memory_space<vmem>>, %arg4: memref<1x2x64xf32, #tpu.memory_space<vmem>>, %arg5: memref<328x128xf32, #tpu.memory_space<vmem>>, %arg6: memref<1x2x256xf32, #tpu.memory_space<vmem>>, %arg7: memref<2x8xf32, #tpu.memory_space<vmem>>, %arg8: memref<2x48xf32, #tpu.memory_space<vmem>>, %arg9: memref<2x32xf32, #tpu.memory_space<vmem>>, %arg10: memref<2x32xf32, #tpu.memory_space<vmem>>, %arg11: memref<2x32xf32, #tpu.memory_space<vmem>>, %arg12: memref<2x8xf32, #tpu.memory_space<vmem>>, %arg13: memref<2x8xf32, #tpu.memory_space<vmem>>) attributes {dimension_semantics = [#tpu.dimension_semantics<arbitrary>], iteration_bounds = array<i64: 4>, scalar_prefetch = 0 : i64, scratch_operands = 7 : i64, tpu.core_type = #tpu.core_type<tc>, window_params = [{pipeline_mode = #tpu.pipeline_mode<synchronous>, transform_indices = @transform_0, window_bounds = array<i64: 2, 256>}, {pipeline_mode = #tpu.pipeline_mode<synchronous>, transform_indices = @transform_1, window_bounds = array<i64: 2, 16, 8>}, {pipeline_mode = #tpu.pipeline_mode<synchronous>, transform_indices = @transform_2, window_bounds = array<i64: 2, 8, 16>}, {transform_indices = @transform_3, window_bounds = array<i64: 1, 2, 64>}, {pipeline_mode = #tpu.pipeline_mode<synchronous>, transform_indices = @transform_4, window_bounds = array<i64: 328, 128>}, {transform_indices = @transform_5, window_bounds = array<i64: 1, 2, 256>}]} {
    %c0_i32 = arith.constant 0 : i32
    %0 = arith.cmpi eq, %arg0, %c0_i32 : i32
    %1 = arith.extui %0 : i1 to i32
    %c0_i32_0 = arith.constant 0 : i32
    %2 = arith.cmpi ne, %1, %c0_i32_0 : i32
    scf.if %2 {
      %c0_80 = arith.constant 0 : index
      %c0_81 = arith.constant 0 : index
      %219 = vector.load %arg1[%c0_80, %c0_81] : memref<2x256xf32, #tpu.memory_space<vmem>>, vector<2x8xf32>
      %c0_82 = arith.constant 0 : index
      %c0_83 = arith.constant 0 : index
      %220 = vector.load %arg7[%c0_82, %c0_83] : memref<2x8xf32, #tpu.memory_space<vmem>>, vector<2x8xf32>
      tpu.vector_store %arg7[%c0_82, %c0_83], %219 {strides = array<i32>} : memref<2x8xf32, #tpu.memory_space<vmem>>, vector<2x8xf32>,
      %c0_84 = arith.constant 0 : index
      %c8_85 = arith.constant 8 : index
      %221 = vector.load %arg1[%c0_84, %c8_85] : memref<2x256xf32, #tpu.memory_space<vmem>>, vector<2x48xf32>
      %c0_86 = arith.constant 0 : index
      %c0_87 = arith.constant 0 : index
      %222 = vector.load %arg8[%c0_86, %c0_87] : memref<2x48xf32, #tpu.memory_space<vmem>>, vector<2x48xf32>
      tpu.vector_store %arg8[%c0_86, %c0_87], %221 {strides = array<i32>} : memref<2x48xf32, #tpu.memory_space<vmem>>, vector<2x48xf32>,
      %c0_88 = arith.constant 0 : index
      %c56 = arith.constant 56 : index
      %223 = vector.load %arg1[%c0_88, %c56] : memref<2x256xf32, #tpu.memory_space<vmem>>, vector<2x32xf32>
      %c0_89 = arith.constant 0 : index
      %c0_90 = arith.constant 0 : index
      %224 = vector.load %arg9[%c0_89, %c0_90] : memref<2x32xf32, #tpu.memory_space<vmem>>, vector<2x32xf32>
      tpu.vector_store %arg9[%c0_89, %c0_90], %223 {strides = array<i32>} : memref<2x32xf32, #tpu.memory_space<vmem>>, vector<2x32xf32>,
      %c0_91 = arith.constant 0 : index
      %c88 = arith.constant 88 : index
      %225 = vector.load %arg1[%c0_91, %c88] : memref<2x256xf32, #tpu.memory_space<vmem>>, vector<2x32xf32>
      %c0_92 = arith.constant 0 : index
      %c0_93 = arith.constant 0 : index
      %226 = vector.load %arg10[%c0_92, %c0_93] : memref<2x32xf32, #tpu.memory_space<vmem>>, vector<2x32xf32>
      tpu.vector_store %arg10[%c0_92, %c0_93], %225 {strides = array<i32>} : memref<2x32xf32, #tpu.memory_space<vmem>>, vector<2x32xf32>,
      %c0_94 = arith.constant 0 : index
      %c120_95 = arith.constant 120 : index
      %227 = vector.load %arg1[%c0_94, %c120_95] : memref<2x256xf32, #tpu.memory_space<vmem>>, vector<2x32xf32>
      %c0_96 = arith.constant 0 : index
      %c0_97 = arith.constant 0 : index
      %228 = vector.load %arg11[%c0_96, %c0_97] : memref<2x32xf32, #tpu.memory_space<vmem>>, vector<2x32xf32>
      tpu.vector_store %arg11[%c0_96, %c0_97], %227 {strides = array<i32>} : memref<2x32xf32, #tpu.memory_space<vmem>>, vector<2x32xf32>,
      %c0_98 = arith.constant 0 : index
      %c152 = arith.constant 152 : index
      %229 = vector.load %arg1[%c0_98, %c152] : memref<2x256xf32, #tpu.memory_space<vmem>>, vector<2x8xf32>
      %c0_99 = arith.constant 0 : index
      %c0_100 = arith.constant 0 : index
      %230 = vector.load %arg12[%c0_99, %c0_100] : memref<2x8xf32, #tpu.memory_space<vmem>>, vector<2x8xf32>
      tpu.vector_store %arg12[%c0_99, %c0_100], %229 {strides = array<i32>} : memref<2x8xf32, #tpu.memory_space<vmem>>, vector<2x8xf32>,
      %c0_101 = arith.constant 0 : index
      %c160_102 = arith.constant 160 : index
      %231 = vector.load %arg1[%c0_101, %c160_102] : memref<2x256xf32, #tpu.memory_space<vmem>>, vector<2x8xf32>
      %c0_103 = arith.constant 0 : index
      %c0_104 = arith.constant 0 : index
      %232 = vector.load %arg13[%c0_103, %c0_104] : memref<2x8xf32, #tpu.memory_space<vmem>>, vector<2x8xf32>
      tpu.vector_store %arg13[%c0_103, %c0_104], %231 {strides = array<i32>} : memref<2x8xf32, #tpu.memory_space<vmem>>, vector<2x8xf32>,
    } else {
    }
    %c0 = arith.constant 0 : index
    %c0_1 = arith.constant 0 : index
    %3 = vector.load %arg7[%c0, %c0_1] : memref<2x8xf32, #tpu.memory_space<vmem>>, vector<2x8xf32>
    %c0_2 = arith.constant 0 : index
    %c0_3 = arith.constant 0 : index
    %4 = vector.load %arg8[%c0_2, %c0_3] : memref<2x48xf32, #tpu.memory_space<vmem>>, vector<2x48xf32>
    %c0_4 = arith.constant 0 : index
    %c0_5 = arith.constant 0 : index
    %5 = vector.load %arg9[%c0_4, %c0_5] : memref<2x32xf32, #tpu.memory_space<vmem>>, vector<2x32xf32>
    %c0_6 = arith.constant 0 : index
    %c0_7 = arith.constant 0 : index
    %6 = vector.load %arg10[%c0_6, %c0_7] : memref<2x32xf32, #tpu.memory_space<vmem>>, vector<2x32xf32>
    %c0_8 = arith.constant 0 : index
    %c0_9 = arith.constant 0 : index
    %7 = vector.load %arg11[%c0_8, %c0_9] : memref<2x32xf32, #tpu.memory_space<vmem>>, vector<2x32xf32>
    %c0_10 = arith.constant 0 : index
    %c0_11 = arith.constant 0 : index
    %8 = vector.load %arg12[%c0_10, %c0_11] : memref<2x8xf32, #tpu.memory_space<vmem>>, vector<2x8xf32>
    %c0_12 = arith.constant 0 : index
    %c0_13 = arith.constant 0 : index
    %9 = vector.load %arg13[%c0_12, %c0_13] : memref<2x8xf32, #tpu.memory_space<vmem>>, vector<2x8xf32>
    %c0_14 = arith.constant 0 : index
    %c168 = arith.constant 168 : index
    %10 = vector.load %arg1[%c0_14, %c168] : memref<2x256xf32, #tpu.memory_space<vmem>>, vector<2x8xf32>
    %c0_15 = arith.constant 0 : index
    %c0_16 = arith.constant 0 : index
    %c0_17 = arith.constant 0 : index
    %11 = vector.load %arg4[%c0_15, %c0_16, %c0_17] : memref<1x2x64xf32, #tpu.memory_space<vmem>>, vector<1x2x64xf32>
    %12 = vector.shape_cast %11 : vector<1x2x64xf32> to vector<2x64xf32>
    %c0_18 = arith.constant 0 : index
    %c0_19 = arith.constant 0 : index
    %13 = vector.load %arg5[%c0_18, %c0_19] : memref<328x128xf32, #tpu.memory_space<vmem>>, vector<8x32xf32>
    %cst = arith.constant dense<0.000000e+00> : vector<2x32xf32>
    %14 = tpu.matmul %3, %13, %cst {dimension_numbers = #tpu.dot_dimension_numbers<[1], [0], [0], [1], [0, 0, 1, 1], [], []>} : vector<2x8xf32>, vector<8x32xf32>, vector<2x32xf32> -> vector<2x32xf32>
    %cst_20 = arith.constant 0.000000e+00 : f32
    %15 = vector.broadcast %cst_20 : f32 to vector<2x32xf32>
    %16 = arith.maximumf %14, %15 : vector<2x32xf32>
    %17 = vector.extract_strided_slice %12 {offsets = [0, 0], sizes = [2, 32], strides = [1, 1]} : vector<2x64xf32> to vector<2x32xf32>
    %18 = arith.mulf %16, %17 : vector<2x32xf32>
    %cst_21 = arith.constant 2.000000e+00 : f32
    %19 = vector.broadcast %cst_21 : f32 to vector<2x32xf32>
    %20 = arith.mulf %18, %19 : vector<2x32xf32>
    %c8 = arith.constant 8 : index
    %c0_22 = arith.constant 0 : index
    %21 = vector.load %arg5[%c8, %c0_22] : memref<328x128xf32, #tpu.memory_space<vmem>>, vector<32x32xf32>
    %cst_23 = arith.constant dense<0.000000e+00> : vector<2x32xf32>
    %22 = tpu.matmul %20, %21, %cst_23 {dimension_numbers = #tpu.dot_dimension_numbers<[1], [0], [0], [1], [0, 0, 1, 1], [], []>} : vector<2x32xf32>, vector<32x32xf32>, vector<2x32xf32> -> vector<2x32xf32>
    %cst_24 = arith.constant 0.000000e+00 : f32
    %23 = vector.broadcast %cst_24 : f32 to vector<2x32xf32>
    %24 = arith.maximumf %22, %23 : vector<2x32xf32>
    %25 = vector.extract_strided_slice %12 {offsets = [0, 32], sizes = [2, 32], strides = [1, 1]} : vector<2x64xf32> to vector<2x32xf32>
    %26 = arith.mulf %24, %25 : vector<2x32xf32>
    %cst_25 = arith.constant 2.000000e+00 : f32
    %27 = vector.broadcast %cst_25 : f32 to vector<2x32xf32>
    %28 = arith.mulf %26, %27 : vector<2x32xf32>
    %29 = tpu.concatenate %28, %4 in 1 : vector<2x32xf32>, vector<2x48xf32> -> vector<2x80xf32>
    %c40 = arith.constant 40 : index
    %c0_26 = arith.constant 0 : index
    %30 = vector.load %arg5[%c40, %c0_26] : memref<328x128xf32, #tpu.memory_space<vmem>>, vector<80x128xf32>
    %cst_27 = arith.constant dense<0.000000e+00> : vector<2x128xf32>
    %31 = tpu.matmul %29, %30, %cst_27 {dimension_numbers = #tpu.dot_dimension_numbers<[1], [0], [0], [1], [0, 0, 1, 1], [], []>} : vector<2x80xf32>, vector<80x128xf32>, vector<2x128xf32> -> vector<2x128xf32>
    %c120 = arith.constant 120 : index
    %c0_28 = arith.constant 0 : index
    %32 = vector.load %arg5[%c120, %c0_28] : memref<328x128xf32, #tpu.memory_space<vmem>>, vector<1x128xf32>
    %33 = vector.broadcast %32 : vector<1x128xf32> to vector<2x128xf32>
    %34 = arith.addf %31, %33 : vector<2x128xf32>
    %35 = arith.negf %34 : vector<2x128xf32>
    %36 = math.exp %35 : vector<2x128xf32>
    %cst_29 = arith.constant 1.000000e+00 : f32
    %37 = vector.broadcast %cst_29 : f32 to vector<2x128xf32>
    %38 = arith.addf %37, %36 : vector<2x128xf32>
    %39 = arith.divf %37, %38 : vector<2x128xf32>
    %40 = math.tanh %34 : vector<2x128xf32>
    %41 = vector.extract_strided_slice %39 {offsets = [0, 32], sizes = [2, 32], strides = [1, 1]} : vector<2x128xf32> to vector<2x32xf32>
    %42 = arith.mulf %41, %5 : vector<2x32xf32>
    %43 = vector.extract_strided_slice %39 {offsets = [0, 0], sizes = [2, 32], strides = [1, 1]} : vector<2x128xf32> to vector<2x32xf32>
    %44 = vector.extract_strided_slice %40 {offsets = [0, 64], sizes = [2, 32], strides = [1, 1]} : vector<2x128xf32> to vector<2x32xf32>
    %45 = arith.mulf %43, %44 : vector<2x32xf32>
    %46 = arith.addf %42, %45 : vector<2x32xf32>
    %47 = vector.extract_strided_slice %39 {offsets = [0, 96], sizes = [2, 32], strides = [1, 1]} : vector<2x128xf32> to vector<2x32xf32>
    %48 = math.tanh %46 : vector<2x32xf32>
    %49 = arith.mulf %47, %48 : vector<2x32xf32>
    %c128 = arith.constant 128 : index
    %c0_30 = arith.constant 0 : index
    %50 = vector.load %arg5[%c128, %c0_30] : memref<328x128xf32, #tpu.memory_space<vmem>>, vector<32x16xf32>
    %cst_31 = arith.constant dense<0.000000e+00> : vector<2x16xf32>
    %51 = tpu.matmul %49, %50, %cst_31 {dimension_numbers = #tpu.dot_dimension_numbers<[1], [0], [0], [1], [0, 0, 1, 1], [], []>} : vector<2x32xf32>, vector<32x16xf32>, vector<2x16xf32> -> vector<2x16xf32>
    %c160 = arith.constant 160 : index
    %c0_32 = arith.constant 0 : index
    %52 = vector.load %arg5[%c160, %c0_32] : memref<328x128xf32, #tpu.memory_space<vmem>>, vector<10x16xf32>
    %cst_33 = arith.constant 0.000000e+00 : f32
    %53 = vector.broadcast %cst_33 : f32 to vector<2x8x16xf32>
    %cst_34 = arith.constant 0.000000e+00 : f32
    %54 = vector.broadcast %cst_34 : f32 to vector<2x2xf32>
    %55 = vector.extract_strided_slice %8 {offsets = [0, 0], sizes = [2, 6], strides = [1, 1]} : vector<2x8xf32> to vector<2x6xf32>
    %56 = tpu.concatenate %54, %55 in 1 : vector<2x2xf32>, vector<2x6xf32> -> vector<2x8xf32>
    %57 = vector.shape_cast %56 : vector<2x8xf32> to vector<2x8x1xf32>
    %58 = vector.extract_strided_slice %52 {offsets = [0, 0], sizes = [1, 16], strides = [1, 1]} : vector<10x16xf32> to vector<1x16xf32>
    %59 = vector.shape_cast %58 : vector<1x16xf32> to vector<1x1x16xf32>
    %60 = vector.broadcast %57 : vector<2x8x1xf32> to vector<2x8x16xf32>
    %61 = vector.broadcast %59 : vector<1x1x16xf32> to vector<2x8x16xf32>
    %62 = arith.mulf %60, %61 : vector<2x8x16xf32>
    %63 = arith.addf %53, %62 : vector<2x8x16xf32>
    %cst_35 = arith.constant 0.000000e+00 : f32
    %64 = vector.broadcast %cst_35 : f32 to vector<2x2xf32>
    %65 = vector.extract_strided_slice %9 {offsets = [0, 0], sizes = [2, 6], strides = [1, 1]} : vector<2x8xf32> to vector<2x6xf32>
    %66 = tpu.concatenate %64, %65 in 1 : vector<2x2xf32>, vector<2x6xf32> -> vector<2x8xf32>
    %67 = vector.shape_cast %66 : vector<2x8xf32> to vector<2x8x1xf32>
    %68 = vector.extract_strided_slice %52 {offsets = [5, 0], sizes = [1, 16], strides = [1, 1]} : vector<10x16xf32> to vector<1x16xf32>
    %69 = vector.shape_cast %68 : vector<1x16xf32> to vector<1x1x16xf32>
    %70 = vector.broadcast %67 : vector<2x8x1xf32> to vector<2x8x16xf32>
    %71 = vector.broadcast %69 : vector<1x1x16xf32> to vector<2x8x16xf32>
    %72 = arith.mulf %70, %71 : vector<2x8x16xf32>
    %73 = arith.addf %63, %72 : vector<2x8x16xf32>
    %cst_36 = arith.constant 0.000000e+00 : f32
    %74 = vector.broadcast %cst_36 : f32 to vector<2x1xf32>
    %75 = vector.extract_strided_slice %8 {offsets = [0, 0], sizes = [2, 7], strides = [1, 1]} : vector<2x8xf32> to vector<2x7xf32>
    %76 = tpu.concatenate %74, %75 in 1 : vector<2x1xf32>, vector<2x7xf32> -> vector<2x8xf32>
    %77 = vector.shape_cast %76 : vector<2x8xf32> to vector<2x8x1xf32>
    %78 = vector.extract_strided_slice %52 {offsets = [1, 0], sizes = [1, 16], strides = [1, 1]} : vector<10x16xf32> to vector<1x16xf32>
    %79 = vector.shape_cast %78 : vector<1x16xf32> to vector<1x1x16xf32>
    %80 = vector.broadcast %77 : vector<2x8x1xf32> to vector<2x8x16xf32>
    %81 = vector.broadcast %79 : vector<1x1x16xf32> to vector<2x8x16xf32>
    %82 = arith.mulf %80, %81 : vector<2x8x16xf32>
    %83 = arith.addf %73, %82 : vector<2x8x16xf32>
    %cst_37 = arith.constant 0.000000e+00 : f32
    %84 = vector.broadcast %cst_37 : f32 to vector<2x1xf32>
    %85 = vector.extract_strided_slice %9 {offsets = [0, 0], sizes = [2, 7], strides = [1, 1]} : vector<2x8xf32> to vector<2x7xf32>
    %86 = tpu.concatenate %84, %85 in 1 : vector<2x1xf32>, vector<2x7xf32> -> vector<2x8xf32>
    %87 = vector.shape_cast %86 : vector<2x8xf32> to vector<2x8x1xf32>
    %88 = vector.extract_strided_slice %52 {offsets = [6, 0], sizes = [1, 16], strides = [1, 1]} : vector<10x16xf32> to vector<1x16xf32>
    %89 = vector.shape_cast %88 : vector<1x16xf32> to vector<1x1x16xf32>
    %90 = vector.broadcast %87 : vector<2x8x1xf32> to vector<2x8x16xf32>
    %91 = vector.broadcast %89 : vector<1x1x16xf32> to vector<2x8x16xf32>
    %92 = arith.mulf %90, %91 : vector<2x8x16xf32>
    %93 = arith.addf %83, %92 : vector<2x8x16xf32>
    %94 = vector.shape_cast %8 : vector<2x8xf32> to vector<2x8x1xf32>
    %95 = vector.extract_strided_slice %52 {offsets = [2, 0], sizes = [1, 16], strides = [1, 1]} : vector<10x16xf32> to vector<1x16xf32>
    %96 = vector.shape_cast %95 : vector<1x16xf32> to vector<1x1x16xf32>
    %97 = vector.broadcast %94 : vector<2x8x1xf32> to vector<2x8x16xf32>
    %98 = vector.broadcast %96 : vector<1x1x16xf32> to vector<2x8x16xf32>
    %99 = arith.mulf %97, %98 : vector<2x8x16xf32>
    %100 = arith.addf %93, %99 : vector<2x8x16xf32>
    %101 = vector.shape_cast %9 : vector<2x8xf32> to vector<2x8x1xf32>
    %102 = vector.extract_strided_slice %52 {offsets = [7, 0], sizes = [1, 16], strides = [1, 1]} : vector<10x16xf32> to vector<1x16xf32>
    %103 = vector.shape_cast %102 : vector<1x16xf32> to vector<1x1x16xf32>
    %104 = vector.broadcast %101 : vector<2x8x1xf32> to vector<2x8x16xf32>
    %105 = vector.broadcast %103 : vector<1x1x16xf32> to vector<2x8x16xf32>
    %106 = arith.mulf %104, %105 : vector<2x8x16xf32>
    %107 = arith.addf %100, %106 : vector<2x8x16xf32>
    %108 = vector.extract_strided_slice %8 {offsets = [0, 1], sizes = [2, 7], strides = [1, 1]} : vector<2x8xf32> to vector<2x7xf32>
    %cst_38 = arith.constant 0.000000e+00 : f32
    %109 = vector.broadcast %cst_38 : f32 to vector<2x1xf32>
    %110 = tpu.concatenate %108, %109 in 1 : vector<2x7xf32>, vector<2x1xf32> -> vector<2x8xf32>
    %111 = vector.shape_cast %110 : vector<2x8xf32> to vector<2x8x1xf32>
    %112 = vector.extract_strided_slice %52 {offsets = [3, 0], sizes = [1, 16], strides = [1, 1]} : vector<10x16xf32> to vector<1x16xf32>
    %113 = vector.shape_cast %112 : vector<1x16xf32> to vector<1x1x16xf32>
    %114 = vector.broadcast %111 : vector<2x8x1xf32> to vector<2x8x16xf32>
    %115 = vector.broadcast %113 : vector<1x1x16xf32> to vector<2x8x16xf32>
    %116 = arith.mulf %114, %115 : vector<2x8x16xf32>
    %117 = arith.addf %107, %116 : vector<2x8x16xf32>
    %118 = vector.extract_strided_slice %9 {offsets = [0, 1], sizes = [2, 7], strides = [1, 1]} : vector<2x8xf32> to vector<2x7xf32>
    %cst_39 = arith.constant 0.000000e+00 : f32
    %119 = vector.broadcast %cst_39 : f32 to vector<2x1xf32>
    %120 = tpu.concatenate %118, %119 in 1 : vector<2x7xf32>, vector<2x1xf32> -> vector<2x8xf32>
    %121 = vector.shape_cast %120 : vector<2x8xf32> to vector<2x8x1xf32>
    %122 = vector.extract_strided_slice %52 {offsets = [8, 0], sizes = [1, 16], strides = [1, 1]} : vector<10x16xf32> to vector<1x16xf32>
    %123 = vector.shape_cast %122 : vector<1x16xf32> to vector<1x1x16xf32>
    %124 = vector.broadcast %121 : vector<2x8x1xf32> to vector<2x8x16xf32>
    %125 = vector.broadcast %123 : vector<1x1x16xf32> to vector<2x8x16xf32>
    %126 = arith.mulf %124, %125 : vector<2x8x16xf32>
    %127 = arith.addf %117, %126 : vector<2x8x16xf32>
    %128 = vector.extract_strided_slice %8 {offsets = [0, 2], sizes = [2, 6], strides = [1, 1]} : vector<2x8xf32> to vector<2x6xf32>
    %cst_40 = arith.constant 0.000000e+00 : f32
    %129 = vector.broadcast %cst_40 : f32 to vector<2x2xf32>
    %130 = tpu.concatenate %128, %129 in 1 : vector<2x6xf32>, vector<2x2xf32> -> vector<2x8xf32>
    %131 = vector.shape_cast %130 : vector<2x8xf32> to vector<2x8x1xf32>
    %132 = vector.extract_strided_slice %52 {offsets = [4, 0], sizes = [1, 16], strides = [1, 1]} : vector<10x16xf32> to vector<1x16xf32>
    %133 = vector.shape_cast %132 : vector<1x16xf32> to vector<1x1x16xf32>
    %134 = vector.broadcast %131 : vector<2x8x1xf32> to vector<2x8x16xf32>
    %135 = vector.broadcast %133 : vector<1x1x16xf32> to vector<2x8x16xf32>
    %136 = arith.mulf %134, %135 : vector<2x8x16xf32>
    %137 = arith.addf %127, %136 : vector<2x8x16xf32>
    %138 = vector.extract_strided_slice %9 {offsets = [0, 2], sizes = [2, 6], strides = [1, 1]} : vector<2x8xf32> to vector<2x6xf32>
    %cst_41 = arith.constant 0.000000e+00 : f32
    %139 = vector.broadcast %cst_41 : f32 to vector<2x2xf32>
    %140 = tpu.concatenate %138, %139 in 1 : vector<2x6xf32>, vector<2x2xf32> -> vector<2x8xf32>
    %141 = vector.shape_cast %140 : vector<2x8xf32> to vector<2x8x1xf32>
    %142 = vector.extract_strided_slice %52 {offsets = [9, 0], sizes = [1, 16], strides = [1, 1]} : vector<10x16xf32> to vector<1x16xf32>
    %143 = vector.shape_cast %142 : vector<1x16xf32> to vector<1x1x16xf32>
    %144 = vector.broadcast %141 : vector<2x8x1xf32> to vector<2x8x16xf32>
    %145 = vector.broadcast %143 : vector<1x1x16xf32> to vector<2x8x16xf32>
    %146 = arith.mulf %144, %145 : vector<2x8x16xf32>
    %147 = arith.addf %137, %146 : vector<2x8x16xf32>
    %148 = vector.shape_cast %51 : vector<2x16xf32> to vector<2x1x16xf32>
    %149 = vector.broadcast %148 : vector<2x1x16xf32> to vector<2x8x16xf32>
    %150 = arith.addf %149, %147 : vector<2x8x16xf32>
    %c0_42 = arith.constant 0 : index
    %c0_43 = arith.constant 0 : index
    %c0_44 = arith.constant 0 : index
    %151 = vector.load %arg3[%c0_42, %c0_43, %c0_44] : memref<2x8x16xf32, #tpu.memory_space<vmem>>, vector<2x8x16xf32>
    %152 = arith.addf %150, %151 : vector<2x8x16xf32>
    %153 = math.tanh %152 : vector<2x8x16xf32>
    %c176 = arith.constant 176 : index
    %c0_45 = arith.constant 0 : index
    %154 = vector.load %arg5[%c176, %c0_45] : memref<328x128xf32, #tpu.memory_space<vmem>>, vector<1x16xf32>
    %155 = vector.shape_cast %154 : vector<1x16xf32> to vector<1x1x16xf32>
    %156 = vector.broadcast %155 : vector<1x1x16xf32> to vector<2x8x16xf32>
    %157 = arith.mulf %153, %156 : vector<2x8x16xf32>
    %cst_46 = arith.constant dense<0.000000e+00> : vector<2x8xf32>
    %158 = vector.multi_reduction <add>, %157, %cst_46 [2] : vector<2x8x16xf32> to vector<2x8xf32>
    %cst_47 = arith.constant 5.000000e-01 : f32
    %159 = vector.broadcast %cst_47 : f32 to vector<2x8xf32>
    %160 = arith.cmpf ogt, %10, %159 : vector<2x8xf32>
    %cst_48 = arith.constant -1.000000e+30 : f32
    %161 = vector.broadcast %cst_48 : f32 to vector<2x8xf32>
    %162 = arith.select %160, %161, %158 : vector<2x8xi1>, vector<2x8xf32>
    %cst_49 = arith.constant dense<0xFF800000> : vector<2xf32>
    %163 = vector.multi_reduction <maximumf>, %162, %cst_49 [1] : vector<2x8xf32> to vector<2xf32>
    %164 = vector.shape_cast %163 : vector<2xf32> to vector<2x1xf32>
    %165 = vector.broadcast %164 : vector<2x1xf32> to vector<2x8xf32>
    %166 = arith.subf %162, %165 : vector<2x8xf32>
    %167 = math.exp %166 : vector<2x8xf32>
    %cst_50 = arith.constant dense<0.000000e+00> : vector<2xf32>
    %168 = vector.multi_reduction <add>, %167, %cst_50 [1] : vector<2x8xf32> to vector<2xf32>
    %169 = vector.shape_cast %168 : vector<2xf32> to vector<2x1xf32>
    %170 = vector.broadcast %169 : vector<2x1xf32> to vector<2x8xf32>
    %171 = arith.divf %167, %170 : vector<2x8xf32>
    %172 = arith.addf %9, %171 : vector<2x8xf32>
    %173 = vector.shape_cast %171 : vector<2x8xf32> to vector<2x1x8xf32>
    %c0_51 = arith.constant 0 : index
    %c0_52 = arith.constant 0 : index
    %c0_53 = arith.constant 0 : index
    %174 = vector.load %arg2[%c0_51, %c0_52, %c0_53] : memref<2x16x8xf32, #tpu.memory_space<vmem>>, vector<2x16x8xf32>
    %175 = vector.broadcast %173 : vector<2x1x8xf32> to vector<2x16x8xf32>
    %176 = arith.mulf %175, %174 : vector<2x16x8xf32>
    %cst_54 = arith.constant dense<0.000000e+00> : vector<2x16xf32>
    %177 = vector.multi_reduction <add>, %176, %cst_54 [2] : vector<2x16x8xf32> to vector<2x16xf32>
    %178 = tpu.concatenate %49, %177, %6 in 1 : vector<2x32xf32>, vector<2x16xf32>, vector<2x32xf32> -> vector<2x80xf32>
    %c184 = arith.constant 184 : index
    %c0_55 = arith.constant 0 : index
    %179 = vector.load %arg5[%c184, %c0_55] : memref<328x128xf32, #tpu.memory_space<vmem>>, vector<80x128xf32>
    %cst_56 = arith.constant dense<0.000000e+00> : vector<2x128xf32>
    %180 = tpu.matmul %178, %179, %cst_56 {dimension_numbers = #tpu.dot_dimension_numbers<[1], [0], [0], [1], [0, 0, 1, 1], [], []>} : vector<2x80xf32>, vector<80x128xf32>, vector<2x128xf32> -> vector<2x128xf32>
    %c264 = arith.constant 264 : index
    %c0_57 = arith.constant 0 : index
    %181 = vector.load %arg5[%c264, %c0_57] : memref<328x128xf32, #tpu.memory_space<vmem>>, vector<1x128xf32>
    %182 = vector.broadcast %181 : vector<1x128xf32> to vector<2x128xf32>
    %183 = arith.addf %180, %182 : vector<2x128xf32>
    %184 = arith.negf %183 : vector<2x128xf32>
    %185 = math.exp %184 : vector<2x128xf32>
    %cst_58 = arith.constant 1.000000e+00 : f32
    %186 = vector.broadcast %cst_58 : f32 to vector<2x128xf32>
    %187 = arith.addf %186, %185 : vector<2x128xf32>
    %188 = arith.divf %186, %187 : vector<2x128xf32>
    %189 = math.tanh %183 : vector<2x128xf32>
    %190 = vector.extract_strided_slice %188 {offsets = [0, 32], sizes = [2, 32], strides = [1, 1]} : vector<2x128xf32> to vector<2x32xf32>
    %191 = arith.mulf %190, %7 : vector<2x32xf32>
    %192 = vector.extract_strided_slice %188 {offsets = [0, 0], sizes = [2, 32], strides = [1, 1]} : vector<2x128xf32> to vector<2x32xf32>
    %193 = vector.extract_strided_slice %189 {offsets = [0, 64], sizes = [2, 32], strides = [1, 1]} : vector<2x128xf32> to vector<2x32xf32>
    %194 = arith.mulf %192, %193 : vector<2x32xf32>
    %195 = arith.addf %191, %194 : vector<2x32xf32>
    %196 = vector.extract_strided_slice %188 {offsets = [0, 96], sizes = [2, 32], strides = [1, 1]} : vector<2x128xf32> to vector<2x32xf32>
    %197 = math.tanh %195 : vector<2x32xf32>
    %198 = arith.mulf %196, %197 : vector<2x32xf32>
    %199 = tpu.concatenate %198, %177 in 1 : vector<2x32xf32>, vector<2x16xf32> -> vector<2x48xf32>
    %c272 = arith.constant 272 : index
    %c0_59 = arith.constant 0 : index
    %200 = vector.load %arg5[%c272, %c0_59] : memref<328x128xf32, #tpu.memory_space<vmem>>, vector<48x9xf32>
    %cst_60 = arith.constant dense<0.000000e+00> : vector<2x9xf32>
    %201 = tpu.matmul %199, %200, %cst_60 {dimension_numbers = #tpu.dot_dimension_numbers<[1], [0], [0], [1], [0, 0, 1, 1], [], []>} : vector<2x48xf32>, vector<48x9xf32>, vector<2x9xf32> -> vector<2x9xf32>
    %c320 = arith.constant 320 : index
    %c0_61 = arith.constant 0 : index
    %202 = vector.load %arg5[%c320, %c0_61] : memref<328x128xf32, #tpu.memory_space<vmem>>, vector<1x9xf32>
    %203 = vector.broadcast %202 : vector<1x9xf32> to vector<2x9xf32>
    %204 = arith.addf %201, %203 : vector<2x9xf32>
    %205 = vector.extract_strided_slice %204 {offsets = [0, 0], sizes = [2, 8], strides = [1, 1]} : vector<2x9xf32> to vector<2x8xf32>
    %c0_62 = arith.constant 0 : index
    %c0_63 = arith.constant 0 : index
    %206 = vector.load %arg7[%c0_62, %c0_63] : memref<2x8xf32, #tpu.memory_space<vmem>>, vector<2x8xf32>
    tpu.vector_store %arg7[%c0_62, %c0_63], %205 {strides = array<i32>} : memref<2x8xf32, #tpu.memory_space<vmem>>, vector<2x8xf32>,
    %207 = tpu.concatenate %177, %49 in 1 : vector<2x16xf32>, vector<2x32xf32> -> vector<2x48xf32>
    %c0_64 = arith.constant 0 : index
    %c0_65 = arith.constant 0 : index
    %208 = vector.load %arg8[%c0_64, %c0_65] : memref<2x48xf32, #tpu.memory_space<vmem>>, vector<2x48xf32>
    tpu.vector_store %arg8[%c0_64, %c0_65], %207 {strides = array<i32>} : memref<2x48xf32, #tpu.memory_space<vmem>>, vector<2x48xf32>,
    %c0_66 = arith.constant 0 : index
    %c0_67 = arith.constant 0 : index
    %209 = vector.load %arg9[%c0_66, %c0_67] : memref<2x32xf32, #tpu.memory_space<vmem>>, vector<2x32xf32>
    tpu.vector_store %arg9[%c0_66, %c0_67], %46 {strides = array<i32>} : memref<2x32xf32, #tpu.memory_space<vmem>>, vector<2x32xf32>,
    %c0_68 = arith.constant 0 : index
    %c0_69 = arith.constant 0 : index
    %210 = vector.load %arg10[%c0_68, %c0_69] : memref<2x32xf32, #tpu.memory_space<vmem>>, vector<2x32xf32>
    tpu.vector_store %arg10[%c0_68, %c0_69], %198 {strides = array<i32>} : memref<2x32xf32, #tpu.memory_space<vmem>>, vector<2x32xf32>,
    %c0_70 = arith.constant 0 : index
    %c0_71 = arith.constant 0 : index
    %211 = vector.load %arg11[%c0_70, %c0_71] : memref<2x32xf32, #tpu.memory_space<vmem>>, vector<2x32xf32>
    tpu.vector_store %arg11[%c0_70, %c0_71], %195 {strides = array<i32>} : memref<2x32xf32, #tpu.memory_space<vmem>>, vector<2x32xf32>,
    %c0_72 = arith.constant 0 : index
    %c0_73 = arith.constant 0 : index
    %212 = vector.load %arg12[%c0_72, %c0_73] : memref<2x8xf32, #tpu.memory_space<vmem>>, vector<2x8xf32>
    tpu.vector_store %arg12[%c0_72, %c0_73], %171 {strides = array<i32>} : memref<2x8xf32, #tpu.memory_space<vmem>>, vector<2x8xf32>,
    %c0_74 = arith.constant 0 : index
    %c0_75 = arith.constant 0 : index
    %213 = vector.load %arg13[%c0_74, %c0_75] : memref<2x8xf32, #tpu.memory_space<vmem>>, vector<2x8xf32>
    tpu.vector_store %arg13[%c0_74, %c0_75], %172 {strides = array<i32>} : memref<2x8xf32, #tpu.memory_space<vmem>>, vector<2x8xf32>,
    %cst_76 = arith.constant 0.000000e+00 : f32
    %214 = vector.broadcast %cst_76 : f32 to vector<2x87xf32>
    %215 = tpu.concatenate %204, %49, %46, %198, %195, %171, %172, %177, %214 in 1 : vector<2x9xf32>, vector<2x32xf32>, vector<2x32xf32>, vector<2x32xf32>, vector<2x32xf32>, vector<2x8xf32>, vector<2x8xf32>, vector<2x16xf32>, vector<2x87xf32> -> vector<2x256xf32>
    %c0_77 = arith.constant 0 : index
    %c0_78 = arith.constant 0 : index
    %c0_79 = arith.constant 0 : index
    %216 = vector.load %arg6[%c0_77, %c0_78, %c0_79] : memref<1x2x256xf32, #tpu.memory_space<vmem>>, vector<1x2x256xf32>
    %217 = vector.shape_cast %216 : vector<1x2x256xf32> to vector<2x256xf32>
    %218 = vector.shape_cast %215 : vector<2x256xf32> to vector<1x2x256xf32>
    tpu.vector_store %arg6[%c0_77, %c0_78, %c0_79], %218 {strides = array<i32>} : memref<1x2x256xf32, #tpu.memory_space<vmem>>, vector<1x2x256xf32>,
    return
  }
  func.func @transform_0(%arg0: i32) -> (i32, i32) {
    %c0_i32 = arith.constant 0 : i32
    %c0_i32_0 = arith.constant 0 : i32
    %c0_i32_1 = arith.constant 0 : i32
    return %c0_i32, %c0_i32_0 : i32, i32
  }
  func.func @transform_1(%arg0: i32) -> (i32, i32, i32) {
    %c0_i32 = arith.constant 0 : i32
    %c0_i32_0 = arith.constant 0 : i32
    %c0_i32_1 = arith.constant 0 : i32
    %c0_i32_2 = arith.constant 0 : i32
    return %c0_i32, %c0_i32_0, %c0_i32_1 : i32, i32, i32
  }
  func.func @transform_2(%arg0: i32) -> (i32, i32, i32) {
    %c0_i32 = arith.constant 0 : i32
    %c0_i32_0 = arith.constant 0 : i32
    %c0_i32_1 = arith.constant 0 : i32
    %c0_i32_2 = arith.constant 0 : i32
    return %c0_i32, %c0_i32_0, %c0_i32_1 : i32, i32, i32
  }
  func.func @transform_3(%arg0: i32) -> (i32, i32, i32) {
    %c0_i32 = arith.constant 0 : i32
    %c0_i32_0 = arith.constant 0 : i32
    %c0_i32_1 = arith.constant 0 : i32
    return %arg0, %c0_i32, %c0_i32_0 : i32, i32, i32
  }
  func.func @transform_4(%arg0: i32) -> (i32, i32) {
    %c0_i32 = arith.constant 0 : i32
    %c0_i32_0 = arith.constant 0 : i32
    %c0_i32_1 = arith.constant 0 : i32
    return %c0_i32, %c0_i32_0 : i32, i32
  }
  func.func @transform_5(%arg0: i32) -> (i32, i32, i32) {
    %c0_i32 = arith.constant 0 : i32
    %c0_i32_0 = arith.constant 0 : i32
    %c0_i32_1 = arith.constant 0 : i32
    return %arg0, %c0_i32, %c0_i32_0 : i32, i32, i32
  }
}

</mosaic_0001>

<llo_original>
// kernel: decode_loop.1
$region0: #{decode_loop.1}
  #allocation0 [shape = 'u32[]', space=smem, size = 0x4, offset = 0x4, fixed_abs, tag = 'smem constant byte address 0x4 - core index']
  #allocation1 [shape = 'u32[144,128]{1,0:T(1,128)}', space=vmem, size = 0x12000, scoped, tag = 'internal scratch']
  #allocation2 [shape = 'f32[2,8]{1,0:T(2,128)}', space=vmem, size = 0x400, scoped, tag = 'scratch operand']
  #allocation3 [shape = 'f32[2,48]{1,0:T(2,128)}', space=vmem, size = 0x400, scoped, tag = 'scratch operand']
  #allocation4 [shape = 'f32[2,32]{1,0:T(2,128)}', space=vmem, size = 0x400, scoped, tag = 'scratch operand']
  #allocation5 [shape = 'f32[2,32]{1,0:T(2,128)}', space=vmem, size = 0x400, scoped, tag = 'scratch operand']
  #allocation6 [shape = 'f32[2,32]{1,0:T(2,128)}', space=vmem, size = 0x400, scoped, tag = 'scratch operand']
  #allocation7 [shape = 'f32[2,8]{1,0:T(2,128)}', space=vmem, size = 0x400, scoped, tag = 'scratch operand']
  #allocation8 [shape = 'f32[2,8]{1,0:T(2,128)}', space=vmem, size = 0x400, scoped, tag = 'scratch operand']
  %s0 = inlined_call_operand.vmem [shape: f32[2,256], index: 0, kind: input, shape index: {}]
  %s1 = inlined_call_operand.vmem [shape: f32[2,16,8], index: 1, kind: input, shape index: {}]
  %s2 = inlined_call_operand.vmem [shape: f32[2,8,16], index: 2, kind: input, shape index: {}]
  %s3 = inlined_call_operand.vmem [shape: f32[4,2,64], index: 3, kind: input, shape index: {}]
  %s4 = inlined_call_operand.hbm [shape: f32[328,128], index: 4, kind: input, shape index: {}]
  %s5 = inlined_call_operand.vmem [shape: f32[4,2,256], index: 5, kind: output, shape index: {}]
  %s6 = sld [smem:[#allocation0]]
  $region61: #{decode_loop.1} parent=0
    _
  %s8 = ssub.s32 1, %s6
  %s9 = scalar_select 0, %s8, %s6
  $region1: #{decode_loop.1} parent=0
    #allocation9 [shape = 'u8[167936]{0}', space=vmem, size = 0x29000, scoped, tag = 'input window, operand 4, single buffered']
    #allocation10 [shape = 's32[2]{0}', space=sflag, size = 0x8, scoped, tag = 'scoped memory for decode_loop.1']
    %10 = vsyncpa [#allocation10], 0
    loop: start=0, step=1, limit=6
    $region2: #{decode_loop.1} parent=1 // loop_pre_header
      _
    $region3: #{decode_loop.1} parent=1 // loop_header
      %s12 = sphi 0, %s16
      %p13 = scmp.ge.s32.totalorder %s12, 6
      %s20 = sphi 0, %s20
      %s22 = sphi 0, %s20
      %s23 = sphi 0, %s22
      %s37 = sphi 0, %s23
      %s41 = sphi 0, %s41
      %s43 = sphi 0, %s41
      %s44 = sphi 0, %s43
      %s58 = sphi 0, %s44
      %s62 = sphi 0, %s62
      %s64 = sphi 0, %s62
      %s65 = sphi 0, %s64
      %s79 = sphi 0, %s65
      %s85 = sphi 0, %s87
      %s88 = sphi 0, %s85
      %s89 = sphi 0, %s88
      %s105 = sphi 0, %s89
      %s109 = sphi 0, %s109
      %s111 = sphi 0, %s109
      %s112 = sphi 0, %s111
      %s126 = sphi 0, %s112
      %s132 = sphi 0, %s134
      %s135 = sphi 0, %s132
      %s136 = sphi 0, %s135
      %s152 = sphi 0, %s136
    $region4: #{decode_loop.1} parent=1 // loop_header_branch
      %15 = sbr.rel (%p13) target = $region8
    $region5: #{decode_loop.1} parent=1 // loop_body
      %s17 = ssub.s32 %s12, 1
      %s18 = ssub.s32 %s12, 2
      %s19 = sadd.s32 %s12, 1
      %s21 = sadd.s32 %s20, 1
      %p24 = scmp.eq.s32.totalorder %s12, 3
      %p25 = scmp.ne.s32.totalorder %s20, %s22
      %p26 = scmp.eq.s32.totalorder %s12, 0
      %p27 = por %p25, %p26
      %p28 = scmp.ne.s32.totalorder %s20, %s22
      %p29 = scmp.eq.s32.totalorder %s17, 3
      %p30 = por %p28, %p29
      %p31 = scmp.ne.s32.totalorder %s22, %s23
      %p32 = scmp.eq.s32.totalorder %s17, 0
      %p33 = por %p31, %p32
      %p34 = scmp.ne.s32.totalorder %s22, %s23
      %p35 = scmp.eq.s32.totalorder %s18, 3
      %p36 = por %p34, %p35
      %p38 = scmp.ne.s32.totalorder %s23, %s37
      %p39 = scmp.eq.s32.totalorder %s18, 0
      %p40 = por %p38, %p39
      %s42 = sadd.s32 %s41, 1
      %p45 = scmp.eq.s32.totalorder %s12, 3
      %p46 = scmp.ne.s32.totalorder %s41, %s43
      %p47 = scmp.eq.s32.totalorder %s12, 0
      %p48 = por %p46, %p47
      %p49 = scmp.ne.s32.totalorder %s41, %s43
      %p50 = scmp.eq.s32.totalorder %s17, 3
      %p51 = por %p49, %p50
      %p52 = scmp.ne.s32.totalorder %s43, %s44
      %p53 = scmp.eq.s32.totalorder %s17, 0
      %p54 = por %p52, %p53
      %p55 = scmp.ne.s32.totalorder %s43, %s44
      %p56 = scmp.eq.s32.totalorder %s18, 3
      %p57 = por %p55, %p56
      %p59 = scmp.ne.s32.totalorder %s44, %s58
      %p60 = scmp.eq.s32.totalorder %s18, 0
      %p61 = por %p59, %p60
      %s63 = sadd.s32 %s62, 1
      %p66 = scmp.eq.s32.totalorder %s12, 3
      %p67 = scmp.ne.s32.totalorder %s62, %s64
      %p68 = scmp.eq.s32.totalorder %s12, 0
      %p69 = por %p67, %p68
      %p70 = scmp.ne.s32.totalorder %s62, %s64
      %p71 = scmp.eq.s32.totalorder %s17, 3
      %p72 = por %p70, %p71
      %p73 = scmp.ne.s32.totalorder %s64, %s65
      %p74 = scmp.eq.s32.totalorder %s17, 0
      %p75 = por %p73, %p74
      %p76 = scmp.ne.s32.totalorder %s64, %s65
      %p77 = scmp.eq.s32.totalorder %s18, 3
      %p78 = por %p76, %p77
      %p80 = scmp.ne.s32.totalorder %s65, %s79
      %p81 = scmp.eq.s32.totalorder %s18, 0
      %p82 = por %p80, %p81
      %s83 = ssub.s32 %s12, %s19
      %p84 = scmp.eq.s32.totalorder %s83, 0
      %s86 = sadd.s32 %s85, 1
      %s87 = scalar_select %p84, %s85, %s86
      %p90 = pneg %p84
      %p91 = scmp.eq.s32.totalorder %s12, 3
      %p92 = por %p90, %p91
      %p93 = scmp.ne.s32.totalorder %s85, %s88
      %p94 = scmp.eq.s32.totalorder %s12, 0
      %p95 = por %p93, %p94
      %p96 = scmp.ne.s32.totalorder %s85, %s88
      %p97 = scmp.eq.s32.totalorder %s17, 3
      %p98 = por %p96, %p97
      %p99 = scmp.ne.s32.totalorder %s88, %s89
      %p100 = scmp.eq.s32.totalorder %s17, 0
      %p101 = por %p99, %p100
      %p102 = scmp.ne.s32.totalorder %s88, %s89
      %p103 = scmp.eq.s32.totalorder %s18, 3
      %p104 = por %p102, %p103
      %p106 = scmp.ne.s32.totalorder %s89, %s105
      %p107 = scmp.eq.s32.totalorder %s18, 0
      %p108 = por %p106, %p107
      %s110 = sadd.s32 %s109, 1
      %p113 = scmp.eq.s32.totalorder %s12, 3
      %p114 = scmp.ne.s32.totalorder %s109, %s111
      %p115 = scmp.eq.s32.totalorder %s12, 0
      %p116 = por %p114, %p115
      %p117 = scmp.ne.s32.totalorder %s109, %s111
      %p118 = scmp.eq.s32.totalorder %s17, 3
      %p119 = por %p117, %p118
      %p120 = scmp.ne.s32.totalorder %s111, %s112
      %p121 = scmp.eq.s32.totalorder %s17, 0
      %p122 = por %p120, %p121
      %p123 = scmp.ne.s32.totalorder %s111, %s112
      %p124 = scmp.eq.s32.totalorder %s18, 3
      %p125 = por %p123, %p124
      %p127 = scmp.ne.s32.totalorder %s112, %s126
      %p128 = scmp.eq.s32.totalorder %s18, 0
      %p129 = por %p127, %p128
      %s130 = ssub.s32 %s12, %s19
      %p131 = scmp.eq.s32.totalorder %s130, 0
      %s133 = sadd.s32 %s132, 1
      %s134 = scalar_select %p131, %s132, %s133
      %p137 = pneg %p131
      %p138 = scmp.eq.s32.totalorder %s12, 3
      %p139 = por %p137, %p138
      %p140 = scmp.ne.s32.totalorder %s132, %s135
      %p141 = scmp.eq.s32.totalorder %s12, 0
      %p142 = por %p140, %p141
      %p143 = scmp.ne.s32.totalorder %s132, %s135
      %p144 = scmp.eq.s32.totalorder %s17, 3
      %p145 = por %p143, %p144
      %p146 = scmp.ne.s32.totalorder %s135, %s136
      %p147 = scmp.eq.s32.totalorder %s17, 0
      %p148 = por %p146, %p147
      %p149 = scmp.ne.s32.totalorder %s135, %s136
      %p150 = scmp.eq.s32.totalorder %s18, 3
      %p151 = por %p149, %p150
      %p153 = scmp.ne.s32.totalorder %s136, %s152
      %p154 = scmp.eq.s32.totalorder %s18, 0
      %p155 = por %p153, %p154
      %p156 = scmp.le.s32.totalorder 1, %s12
      %p157 = scmp.lt.s32.totalorder %s12, 5
      %p158 = pnand %p156, %p157
      %p159 = pneg %p158
      // Predicated region
      $region9: #{decode_loop.1} parent=5 // pred_check
        _
      $region10: #{decode_loop.1} parent=5 // pred_check_branch
        %161 = sbr.rel (%p158) target = $region12
      $region11: #{decode_loop.1} parent=5 // pred_region
        %s162 = ssub.s32 %s12, 1
        // Predicated region
        $region13: #{decode_loop.1} parent=11 // pred_check
          %p163 = pneg %p33
        $region14: #{decode_loop.1} parent=11 // pred_check_branch
          %165 = sbr.rel (%p163) target = $region16
        $region15: #{decode_loop.1} parent=11 // pred_region
          _
        $region16: #{decode_loop.1} parent=11 // pred_fallthru
          _
        // Predicated region
        $region17: #{decode_loop.1} parent=11 // pred_check
          %p166 = pneg %p54
        $region18: #{decode_loop.1} parent=11 // pred_check_branch
          %168 = sbr.rel (%p166) target = $region20
        $region19: #{decode_loop.1} parent=11 // pred_region
          _
        $region20: #{decode_loop.1} parent=11 // pred_fallthru
          _
        // Predicated region
        $region21: #{decode_loop.1} parent=11 // pred_check
          %p169 = pneg %p75
        $region22: #{decode_loop.1} parent=11 // pred_check_branch
          %171 = sbr.rel (%p169) target = $region24
        $region23: #{decode_loop.1} parent=11 // pred_region
          _
        $region24: #{decode_loop.1} parent=11 // pred_fallthru
          _
        // Predicated region
        $region25: #{decode_loop.1} parent=11 // pred_check
          %p172 = pneg %p122
        $region26: #{decode_loop.1} parent=11 // pred_check_branch
          %174 = sbr.rel (%p172) target = $region28
        $region27: #{decode_loop.1} parent=11 // pred_region
          %s176 = ssub.s32 5248, 5248
          %177 = vsyncadd [#allocation10], %s176
          %s178 = sshll.u32 [#allocation9], 4
          %s179 = int_to_ptr.vmem [resolvable:$true] %s178
          %184 = dma.hbm_to_vmem [thread:$0]  %s4, 5248, %s179, [#allocation10], 128, 128, 8
        $region28: #{decode_loop.1} parent=11 // pred_fallthru
          _
      $region12: #{decode_loop.1} parent=5 // pred_fallthru
        _
      %p185 = scmp.lt.s32.totalorder %s12, 4
      // Predicated region
      $region29: #{decode_loop.1} parent=5 // pred_check
        %p186 = pneg %p185
      $region30: #{decode_loop.1} parent=5 // pred_check_branch
        %188 = sbr.rel (%p186) target = $region32
      $region31: #{decode_loop.1} parent=5 // pred_region
        // Predicated region
        $region33: #{decode_loop.1} parent=31 // pred_check
          %p189 = pneg %p95
        $region34: #{decode_loop.1} parent=31 // pred_check_branch
          %191 = sbr.rel (%p189) target = $region36
        $region35: #{decode_loop.1} parent=31 // pred_region
          %p192 = scmp.lt.s32.totalorder %s12, 3
          %s193 = scalar_select %p192, %s12, 3
          %s194 = smul.addr %s193, 2
          %s195 = scalar_lea.vmem %s3, %s194
        $region36: #{decode_loop.1} parent=31 // pred_fallthru
          _
      $region32: #{decode_loop.1} parent=5 // pred_fallthru
        _
      %p196 = scmp.le.s32.totalorder 1, %s12
      %p197 = scmp.lt.s32.totalorder %s12, 5
      %p198 = pnand %p196, %p197
      %p199 = pneg %p198
      // Predicated region
      $region37: #{decode_loop.1} parent=5 // pred_check
        _
      $region38: #{decode_loop.1} parent=5 // pred_check_branch
        %201 = sbr.rel (%p198) target = $region40
      $region39: #{decode_loop.1} parent=5 // pred_region
        %s202 = ssub.s32 %s12, 1
        // Predicated region
        $region41: #{decode_loop.1} parent=39 // pred_check
          %p203 = pneg %p122
        $region42: #{decode_loop.1} parent=39 // pred_check_branch
          %205 = sbr.rel (%p203) target = $region44
        $region43: #{decode_loop.1} parent=39 // pred_region
          %206 = dma.done [#allocation10], 5248
        $region44: #{decode_loop.1} parent=39 // pred_fallthru
          _
        %p207 = pneg %p33
        %p208 = pneg %p30
        %p209 = pneg %p54
        %p210 = pneg %p51
        %p211 = pneg %p75
        %p212 = pneg %p72
        %p213 = scmp.lt.s32.totalorder %s17, 3
        %s214 = scalar_select %p213, %s17, 3
        %s215 = smul.addr %s214, 2
        %s216 = scalar_lea.vmem %s3, %s215
        %p217 = pneg %p101
        %p218 = pneg %p98
        %p219 = pneg %p122
        %p220 = pneg %p119
        %p221 = pneg %p148
        %p222 = pneg %p145
        %p223 = scmp.lt.s32.totalorder %s17, 3
        %s224 = scalar_select %p223, %s17, 3
        %s225 = smul.addr %s224, 2
        %s226 = smul.addr %s225, 2
        %s227 = scalar_lea.vmem %s5, %s226
        %p228 = scmp.lt.s32.totalorder %s17, 3
        %s229 = scalar_select %p228, %s17, 3
        %s230 = smul.addr %s229, 2
        %s231 = scalar_lea.vmem %s3, %s230
        %p232 = scmp.lt.s32.totalorder %s17, 3
        %s233 = scalar_select %p232, %s17, 3
        %s234 = smul.addr %s233, 2
        %s235 = smul.addr %s234, 2
        %s236 = scalar_lea.vmem %s5, %s235
        %p237 = scmp.eq.s32.totalorder %s17, 0
        // Predicated region
        $region45: #{decode_loop.1} parent=39 // pred_check
          %p238 = pneg %p237
        $region46: #{decode_loop.1} parent=39 // pred_check_branch
          %240 = sbr.rel (%p238) target = $region48
        $region47: #{decode_loop.1} parent=39 // pred_region
          %v241 = vld [vmem:[%s0] sm:$0x3]
          %vm242 = vcmask 58368
          %243 = vst.msk [vmem:[#allocation2] sm:$0x3] %vm242, %v241
          %v244 = vld [vmem:[%s0] sm:$0x3]
          %v247 = vunpack.c.l.s4 1983009808
          %v248 = vunpack.c.0.s8 %v247
          %v249 = vlaneseq
          %v250 = vshrl.u32 %v249, 7
          %v251 = vsub.s32 %v248, %v250
          %v252 = vrot.slane %v244, %v251
          %253 = vrot.lane.b32.xlu0 %v252, 120
          %v254 = vpop.permute.xlu0 %253
          %vm256 = vcmask 386048
          %257 = vst.msk [vmem:[#allocation3] sm:$0x3] %vm256, %v254
          %v258 = vld [vmem:[%s0] sm:$0x3]
          %v261 = vunpack.c.l.s4 1983009808
          %v262 = vunpack.c.0.s8 %v261
          %v263 = vlaneseq
          %v264 = vshrl.u32 %v263, 7
          %v265 = vsub.s32 %v262, %v264
          %v266 = vrot.slane %v258, %v265
          %267 = vrot.lane.b32.xlu0 %v266, 72
          %v268 = vpop.permute.xlu0 %267
          %vm270 = vcmask 254976
          %271 = vst.msk [vmem:[#allocation4] sm:$0x3] %vm270, %v268
          %v272 = vld [vmem:[%s0] sm:$0x3]
          %v275 = vunpack.c.l.s4 1983009808
          %v276 = vunpack.c.0.s8 %v275
          %v277 = vlaneseq
          %v278 = vshrl.u32 %v277, 7
          %v279 = vsub.s32 %v276, %v278
          %v280 = vrot.slane %v272, %v279
          %281 = vrot.lane.b32.xlu0 %v280, 40
          %v282 = vpop.permute.xlu0 %281
          %284 = vst.msk [vmem:[#allocation5] sm:$0x3] %vm270, %v282
          %v285 = vld [vmem:[%s0] sm:$0xf]
          %v288 = vunpack.c.l.s4 1983009808
          %v289 = vunpack.c.0.s8 %v288
          %v290 = vlaneseq
          %v291 = vshrl.u32 %v290, 7
          %v292 = vsub.s32 %v289, %v291
          %v293 = vrot.slane %v285, %v292
          %v294 = vcombine.high %v293, %v293
          %295 = vrot.lane.b32.xlu0 %v293, 8
          %v296 = vpop.permute.xlu0 %295
          %297 = vrot.lane.b32.xlu0 %v294, 8
          %v298 = vpop.permute.xlu0 %297
          %vm299 = vcmask 64512
          %v300 = vsel %vm299, %v296, %v298
          %302 = vst.msk [vmem:[#allocation6] sm:$0x3] %vm270, %v300
          %v303 = vld [vmem:[%s0 + $0x2] sm:$0x3]
          %v306 = vunpack.c.l.s4 1983009808
          %v307 = vunpack.c.0.s8 %v306
          %v308 = vlaneseq
          %v309 = vshrl.u32 %v308, 7
          %v310 = vsub.s32 %v307, %v309
          %v311 = vrot.slane %v303, %v310
          %312 = vrot.lane.b32.xlu0 %v311, 104
          %v313 = vpop.permute.xlu0 %312
          %315 = vst.msk [vmem:[#allocation7] sm:$0x3] %vm242, %v313
          %v316 = vld [vmem:[%s0 + $0x2] sm:$0x3]
          %v319 = vunpack.c.l.s4 1983009808
          %v320 = vunpack.c.0.s8 %v319
          %v321 = vlaneseq
          %v322 = vshrl.u32 %v321, 7
          %v323 = vsub.s32 %v320, %v322
          %v324 = vrot.slane %v316, %v323
          %325 = vrot.lane.b32.xlu0 %v324, 96
          %v326 = vpop.permute.xlu0 %325
          %328 = vst.msk [vmem:[#allocation8] sm:$0x3] %vm242, %v326
        $region48: #{decode_loop.1} parent=39 // pred_fallthru
          _
        %v329 = vld [vmem:[#allocation2] sm:$0x3]
        %v330 = vld [vmem:[#allocation3] sm:$0x3]
        %v331 = vld [vmem:[#allocation4] sm:$0x3]
        %v332 = vld [vmem:[#allocation5] sm:$0x3]
        %v333 = vld [vmem:[#allocation6] sm:$0x3]
        %v334 = vld [vmem:[#allocation7] sm:$0x3]
        %v335 = vld [vmem:[#allocation8] sm:$0x3]
        %v336 = vld [vmem:[%s0 + $0x2] sm:$0x3]
        %v337 = vld [vmem:[%s231] sm:$0x3]
        %v338 = vld [vmem:[#allocation9] sm:$0xff]
        %vm339 = vcmask 64512
        %v341 = vsel %vm339, %v329, 0
        %343 = vmatprep.subr.mxu0 0.0
        %344 = vmatpush1.msra.mxu0 0.0
        %345 = vmatprep.subr.mxu0 0.0
        %346 = vmatpush1.msra.mxu0 0.0
        %347 = vmatprep.subr.mxu0 0.0
        %348 = vmatpush1.msra.mxu0 0.0
        %349 = vmatprep.subr.mxu0 0.0
        %350 = vmatpush1.msra.mxu0 0.0
        %351 = vmatprep.subr.mxu0 0.0
        %352 = vmatpush1.msra.mxu0 0.0
        %353 = vmatprep.subr.mxu0 0.0
        %354 = vmatpush1.msra.mxu0 0.0
        %355 = vmatprep.subr.mxu0 0.0
        %356 = vmatpush1.msra.mxu0 0.0
        %357 = vmatprep.subr.mxu0 0.0
        %358 = vmatpush1.msra.mxu0 0.0
        %359 = vmatprep.subr.mxu0 0.0
        %360 = vmatpush1.msra.mxu0 0.0
        %361 = vmatprep.subr.mxu0 0.0
        %362 = vmatpush1.msra.mxu0 0.0
        %363 = vmatprep.subr.mxu0 0.0
        %364 = vmatpush1.msra.mxu0 0.0
        %365 = vmatprep.subr.mxu0 0.0
        %366 = vmatpush1.msra.mxu0 0.0
        %367 = vmatprep.subr.mxu0 0.0
        %368 = vmatpush1.msra.mxu0 0.0
        %369 = vmatprep.subr.mxu0 0.0
        %370 = vmatpush1.msra.mxu0 0.0
        %371 = vmatprep.subr.mxu0 0.0
        %372 = vmatpush1.msra.mxu0 0.0
        %373 = vmatprep.subr.mxu0 0.0
        %374 = vmatpush1.msra.mxu0 %v338
        %375 = vmatprep.subr.mxu0 0.0
        %376 = vmatpush2.msra.mxu0 0.0
        %377 = vmatprep.subr.mxu0 0.0
        %378 = vmatpush2.msra.mxu0 0.0
        %379 = vmatprep.subr.mxu0 0.0
        %380 = vmatpush2.msra.mxu0 0.0
        %381 = vmatprep.subr.mxu0 0.0
        %382 = vmatpush2.msra.mxu0 0.0
        %383 = vmatprep.subr.mxu0 0.0
        %384 = vmatpush2.msra.mxu0 0.0
        %385 = vmatprep.subr.mxu0 0.0
        %386 = vmatpush2.msra.mxu0 0.0
        %387 = vmatprep.subr.mxu0 0.0
        %388 = vmatpush2.msra.mxu0 0.0
        %389 = vmatprep.subr.mxu0 0.0
        %390 = vmatpush2.msra.mxu0 0.0
        %391 = vmatprep.subr.mxu0 0.0
        %392 = vmatpush2.msra.mxu0 0.0
        %393 = vmatprep.subr.mxu0 0.0
        %394 = vmatpush2.msra.mxu0 0.0
        %395 = vmatprep.subr.mxu0 0.0
        %396 = vmatpush2.msra.mxu0 0.0
        %397 = vmatprep.subr.mxu0 0.0
        %398 = vmatpush2.msra.mxu0 0.0
        %399 = vmatprep.subr.mxu0 0.0
        %400 = vmatpush2.msra.mxu0 0.0
        %401 = vmatprep.subr.mxu0 0.0
        %402 = vmatpush2.msra.mxu0 0.0
        %403 = vmatprep.subr.mxu0 0.0
        %404 = vmatpush2.msra.mxu0 0.0
        %405 = vmatprep.subr.mxu0 0.0
        %406 = vmatpush2.msra.mxu0 0.0
        %407 = vmatprep.mubr.f32.mxu0 0.0
        %408 = vmatmul.mubr.f32.gmra.mxu0 %v341
        %v409 = vpop.f32.mrf.mxu0
        %v410 = vadd.f32 0.0, %v409
        %v411 = vpop.f32.mrf.mxu0
        %412 = vdwg.mxu0
        %v413 = vmax.f32 %v410, 0.0
        %v414 = vmul.f32 %v413, %v337
        %v415 = vmul.f32 %v414, 2.0
        %v416 = vld [vmem:[#allocation9 + $0x8] sm:$0xff]
        %v417 = vld [vmem:[#allocation9 + $0x10] sm:$0xff]
        %v418 = vld [vmem:[#allocation9 + $0x18] sm:$0xff]
        %v419 = vld [vmem:[#allocation9 + $0x20] sm:$0xff]
        %vm420 = vcmask 261120
        %v422 = vsel %vm420, %v415, 0
        %424 = vmatprep.subr.mxu0 0.0
        %425 = vmatpush1.msra.mxu0 0.0
        %426 = vmatprep.subr.mxu0 0.0
        %427 = vmatpush1.msra.mxu0 0.0
        %428 = vmatprep.subr.mxu0 0.0
        %429 = vmatpush1.msra.mxu0 0.0
        %430 = vmatprep.subr.mxu0 0.0
        %431 = vmatpush1.msra.mxu0 0.0
        %432 = vmatprep.subr.mxu0 0.0
        %433 = vmatpush1.msra.mxu0 0.0
        %434 = vmatprep.subr.mxu0 0.0
        %435 = vmatpush1.msra.mxu0 0.0
        %436 = vmatprep.subr.mxu0 0.0
        %437 = vmatpush1.msra.mxu0 0.0
        %438 = vmatprep.subr.mxu0 0.0
        %439 = vmatpush1.msra.mxu0 0.0
        %440 = vmatprep.subr.mxu0 0.0
        %441 = vmatpush1.msra.mxu0 0.0
        %442 = vmatprep.subr.mxu0 0.0
        %443 = vmatpush1.msra.mxu0 0.0
        %444 = vmatprep.subr.mxu0 0.0
        %445 = vmatpush1.msra.mxu0 0.0
        %446 = vmatprep.subr.mxu0 0.0
        %447 = vmatpush1.msra.mxu0 0.0
        %448 = vmatprep.subr.mxu0 0.0
        %449 = vmatpush1.msra.mxu0 %v419
        %450 = vmatprep.subr.mxu0 0.0
        %451 = vmatpush1.msra.mxu0 %v418
        %452 = vmatprep.subr.mxu0 0.0
        %453 = vmatpush1.msra.mxu0 %v417
        %454 = vmatprep.subr.mxu0 0.0
        %455 = vmatpush1.msra.mxu0 %v416
        %456 = vmatprep.subr.mxu0 0.0
        %457 = vmatpush2.msra.mxu0 0.0
        %458 = vmatprep.subr.mxu0 0.0
        %459 = vmatpush2.msra.mxu0 0.0
        %460 = vmatprep.subr.mxu0 0.0
        %461 = vmatpush2.msra.mxu0 0.0
        %462 = vmatprep.subr.mxu0 0.0
        %463 = vmatpush2.msra.mxu0 0.0
        %464 = vmatprep.subr.mxu0 0.0
        %465 = vmatpush2.msra.mxu0 0.0
        %466 = vmatprep.subr.mxu0 0.0
        %467 = vmatpush2.msra.mxu0 0.0
        %468 = vmatprep.subr.mxu0 0.0
        %469 = vmatpush2.msra.mxu0 0.0
        %470 = vmatprep.subr.mxu0 0.0
        %471 = vmatpush2.msra.mxu0 0.0
        %472 = vmatprep.subr.mxu0 0.0
        %473 = vmatpush2.msra.mxu0 0.0
        %474 = vmatprep.subr.mxu0 0.0
        %475 = vmatpush2.msra.mxu0 0.0
        %476 = vmatprep.subr.mxu0 0.0
        %477 = vmatpush2.msra.mxu0 0.0
        %478 = vmatprep.subr.mxu0 0.0
        %479 = vmatpush2.msra.mxu0 0.0
        %480 = vmatprep.subr.mxu0 0.0
        %481 = vmatpush2.msra.mxu0 0.0
        %482 = vmatprep.subr.mxu0 0.0
        %483 = vmatpush2.msra.mxu0 0.0
        %484 = vmatprep.subr.mxu0 0.0
        %485 = vmatpush2.msra.mxu0 0.0
        %486 = vmatprep.subr.mxu0 0.0
        %487 = vmatpush2.msra.mxu0 0.0
        %488 = vmatprep.mubr.f32.mxu0 0.0
        %489 = vmatmul.mubr.f32.gmra.mxu0 %v422
        %v490 = vpop.f32.mrf.mxu0
        %v491 = vadd.f32 0.0, %v490
        %v492 = vpop.f32.mrf.mxu0
        %493 = vdwg.mxu0
        %v494 = vmax.f32 %v491, 0.0
        %496 = vrot.lane.b32.xlu0 %v337, 96
        %v497 = vpop.permute.xlu0 %496
        %v499 = vmul.f32 %v494, %v497
        %v500 = vmul.f32 %v499, 2.0
        %502 = vrot.lane.b32.xlu0 %v330, 32
        %v503 = vpop.permute.xlu0 %502
        %v505 = vsel %vm420, %v500, %v503
        %v506 = vld [vmem:[#allocation9 + $0x28] sm:$0xff]
        %v507 = vld [vmem:[#allocation9 + $0x30] sm:$0xff]
        %v508 = vld [vmem:[#allocation9 + $0x38] sm:$0xff]
        %v509 = vld [vmem:[#allocation9 + $0x40] sm:$0xff]
        %v510 = vld [vmem:[#allocation9 + $0x48] sm:$0xff]
        %v511 = vld [vmem:[#allocation9 + $0x50] sm:$0xff]
        %v512 = vld [vmem:[#allocation9 + $0x58] sm:$0xff]
        %v513 = vld [vmem:[#allocation9 + $0x60] sm:$0xff]
        %v514 = vld [vmem:[#allocation9 + $0x68] sm:$0xff]
        %v515 = vld [vmem:[#allocation9 + $0x70] sm:$0xff]
        %v516 = vld [vmem:[#allocation9 + $0x78] sm:$0x1]
        %v517 = vlaneseq
        %v518 = vshrl.u32 %v517, 7
        %v519 = vsub.s32 0, %v518
        %v520 = vrot.slane %v516, %v519
        %vm521 = vcmask 654336
        %v523 = vsel %vm521, %v505, 0
        %525 = vmatprep.subr.mxu0 0.0
        %526 = vmatpush1.msra.mxu0 0.0
        %527 = vmatprep.subr.mxu0 0.0
        %528 = vmatpush1.msra.mxu0 0.0
        %529 = vmatprep.subr.mxu0 0.0
        %530 = vmatpush1.msra.mxu0 0.0
        %531 = vmatprep.subr.mxu0 0.0
        %532 = vmatpush1.msra.mxu0 0.0
        %533 = vmatprep.subr.mxu0 0.0
        %534 = vmatpush1.msra.mxu0 0.0
        %535 = vmatprep.subr.mxu0 0.0
        %536 = vmatpush1.msra.mxu0 0.0
        %537 = vmatprep.subr.mxu0 0.0
        %538 = vmatpush1.msra.mxu0 %v515
        %539 = vmatprep.subr.mxu0 0.0
        %540 = vmatpush1.msra.mxu0 %v514
        %541 = vmatprep.subr.mxu0 0.0
        %542 = vmatpush1.msra.mxu0 %v513
        %543 = vmatprep.subr.mxu0 0.0
        %544 = vmatpush1.msra.mxu0 %v512
        %545 = vmatprep.subr.mxu0 0.0
        %546 = vmatpush1.msra.mxu0 %v511
        %547 = vmatprep.subr.mxu0 0.0
        %548 = vmatpush1.msra.mxu0 %v510
        %549 = vmatprep.subr.mxu0 0.0
        %550 = vmatpush1.msra.mxu0 %v509
        %551 = vmatprep.subr.mxu0 0.0
        %552 = vmatpush1.msra.mxu0 %v508
        %553 = vmatprep.subr.mxu0 0.0
        %554 = vmatpush1.msra.mxu0 %v507
        %555 = vmatprep.subr.mxu0 0.0
        %556 = vmatpush1.msra.mxu0 %v506
        %557 = vmatprep.subr.mxu0 0.0
        %558 = vmatpush2.msra.mxu0 0.0
        %559 = vmatprep.subr.mxu0 0.0
        %560 = vmatpush2.msra.mxu0 0.0
        %561 = vmatprep.subr.mxu0 0.0
        %562 = vmatpush2.msra.mxu0 0.0
        %563 = vmatprep.subr.mxu0 0.0
        %564 = vmatpush2.msra.mxu0 0.0
        %565 = vmatprep.subr.mxu0 0.0
        %566 = vmatpush2.msra.mxu0 0.0
        %567 = vmatprep.subr.mxu0 0.0
        %568 = vmatpush2.msra.mxu0 0.0
        %569 = vmatprep.subr.mxu0 0.0
        %570 = vmatpush2.msra.mxu0 0.0
        %571 = vmatprep.subr.mxu0 0.0
        %572 = vmatpush2.msra.mxu0 0.0
        %573 = vmatprep.subr.mxu0 0.0
        %574 = vmatpush2.msra.mxu0 0.0
        %575 = vmatprep.subr.mxu0 0.0
        %576 = vmatpush2.msra.mxu0 0.0
        %577 = vmatprep.subr.mxu0 0.0
        %578 = vmatpush2.msra.mxu0 0.0
        %579 = vmatprep.subr.mxu0 0.0
        %580 = vmatpush2.msra.mxu0 0.0
        %581 = vmatprep.subr.mxu0 0.0
        %582 = vmatpush2.msra.mxu0 0.0
        %583 = vmatprep.subr.mxu0 0.0
        %584 = vmatpush2.msra.mxu0 0.0
        %585 = vmatprep.subr.mxu0 0.0
        %586 = vmatpush2.msra.mxu0 0.0
        %587 = vmatprep.subr.mxu0 0.0
        %588 = vmatpush2.msra.mxu0 0.0
        %589 = vmatprep.mubr.f32.mxu0 0.0
        %590 = vmatmul.mubr.f32.gmra.mxu0 %v523
        %v591 = vpop.f32.mrf.mxu0
        %v592 = vadd.f32 %v520, %v591
        %v593 = vpop.f32.mrf.mxu0
        %594 = vdwg.mxu0
        %v595 = vxor.u32 %v592, 2147483648
        %v596 = vmul.f32 %v595, 1.442695
        %v597 = vpow.pop %v596
        %v598 = vadd.f32 %v597, 1.0
        %v599 = vrcp.pop %v598
        %v600 = vmul.f32 1.0, %v599
        %v601 = vtanh.pop %v592
        %603 = vrot.lane.b32.xlu0 %v331, 32
        %v604 = vpop.permute.xlu0 %603
        %v606 = vmul.f32 %v600, %v604
        %608 = vrot.lane.b32.xlu0 %v601, 64
        %v609 = vpop.permute.xlu0 %608
        %v611 = vmul.f32 %v600, %v609
        %613 = vrot.lane.b32.xlu0 %v611, 32
        %v614 = vpop.permute.xlu0 %613
        %v616 = vadd.f32 %v606, %v614
        %v617 = vtanh.pop %v616
        %619 = vrot.lane.b32.xlu0 %v617, 64
        %v620 = vpop.permute.xlu0 %619
        %v622 = vmul.f32 %v600, %v620
        %v623 = vld [vmem:[#allocation9 + $0x80] sm:$0xff]
        %v624 = vld [vmem:[#allocation9 + $0x88] sm:$0xff]
        %v625 = vld [vmem:[#allocation9 + $0x90] sm:$0xff]
        %v626 = vld [vmem:[#allocation9 + $0x98] sm:$0xff]
        %628 = vrot.lane.b32.xlu0 %v622, 32
        %v629 = vpop.permute.xlu0 %628
        %v630 = vsel %vm420, %v629, 0
        %632 = vmatprep.subr.mxu0 0.0
        %633 = vmatpush1.msra.mxu0 0.0
        %634 = vmatprep.subr.mxu0 0.0
        %635 = vmatpush1.msra.mxu0 0.0
        %636 = vmatprep.subr.mxu0 0.0
        %637 = vmatpush1.msra.mxu0 0.0
        %638 = vmatprep.subr.mxu0 0.0
        %639 = vmatpush1.msra.mxu0 0.0
        %640 = vmatprep.subr.mxu0 0.0
        %641 = vmatpush1.msra.mxu0 0.0
        %642 = vmatprep.subr.mxu0 0.0
        %643 = vmatpush1.msra.mxu0 0.0
        %644 = vmatprep.subr.mxu0 0.0
        %645 = vmatpush1.msra.mxu0 0.0
        %646 = vmatprep.subr.mxu0 0.0
        %647 = vmatpush1.msra.mxu0 0.0
        %648 = vmatprep.subr.mxu0 0.0
        %649 = vmatpush1.msra.mxu0 0.0
        %650 = vmatprep.subr.mxu0 0.0
        %651 = vmatpush1.msra.mxu0 0.0
        %652 = vmatprep.subr.mxu0 0.0
        %653 = vmatpush1.msra.mxu0 0.0
        %654 = vmatprep.subr.mxu0 0.0
        %655 = vmatpush1.msra.mxu0 0.0
        %656 = vmatprep.subr.mxu0 0.0
        %657 = vmatpush1.msra.mxu0 %v626
        %658 = vmatprep.subr.mxu0 0.0
        %659 = vmatpush1.msra.mxu0 %v625
        %660 = vmatprep.subr.mxu0 0.0
        %661 = vmatpush1.msra.mxu0 %v624
        %662 = vmatprep.subr.mxu0 0.0
        %663 = vmatpush1.msra.mxu0 %v623
        %664 = vmatprep.subr.mxu0 0.0
        %665 = vmatpush2.msra.mxu0 0.0
        %666 = vmatprep.subr.mxu0 0.0
        %667 = vmatpush2.msra.mxu0 0.0
        %668 = vmatprep.subr.mxu0 0.0
        %669 = vmatpush2.msra.mxu0 0.0
        %670 = vmatprep.subr.mxu0 0.0
        %671 = vmatpush2.msra.mxu0 0.0
        %672 = vmatprep.subr.mxu0 0.0
        %673 = vmatpush2.msra.mxu0 0.0
        %674 = vmatprep.subr.mxu0 0.0
        %675 = vmatpush2.msra.mxu0 0.0
        %676 = vmatprep.subr.mxu0 0.0
        %677 = vmatpush2.msra.mxu0 0.0
        %678 = vmatprep.subr.mxu0 0.0
        %679 = vmatpush2.msra.mxu0 0.0
        %680 = vmatprep.subr.mxu0 0.0
        %681 = vmatpush2.msra.mxu0 0.0
        %682 = vmatprep.subr.mxu0 0.0
        %683 = vmatpush2.msra.mxu0 0.0
        %684 = vmatprep.subr.mxu0 0.0
        %685 = vmatpush2.msra.mxu0 0.0
        %686 = vmatprep.subr.mxu0 0.0
        %687 = vmatpush2.msra.mxu0 0.0
        %688 = vmatprep.subr.mxu0 0.0
        %689 = vmatpush2.msra.mxu0 0.0
        %690 = vmatprep.subr.mxu0 0.0
        %691 = vmatpush2.msra.mxu0 0.0
        %692 = vmatprep.subr.mxu0 0.0
        %693 = vmatpush2.msra.mxu0 0.0
        %694 = vmatprep.subr.mxu0 0.0
        %695 = vmatpush2.msra.mxu0 0.0
        %696 = vmatprep.mubr.f32.mxu0 0.0
        %697 = vmatmul.mubr.f32.gmra.mxu0 %v630
        %v698 = vpop.f32.mrf.mxu0
        %v699 = vadd.f32 0.0, %v698
        %v700 = vpop.f32.mrf.mxu0
        %701 = vdwg.mxu0
        %v702 = vld [vmem:[#allocation9 + $0xa0] sm:$0xff]
        %v703 = vld [vmem:[#allocation9 + $0xa8] sm:$0x3]
        %705 = vrot.lane.b32.xlu0 %v334, 2
        %v706 = vpop.permute.xlu0 %705
        %vm708 = vcmask 15360
        %v709 = vsel %vm708, 0.0, %v706
        %v710 = vlaneseq
        %v711 = vshrl.u32 %v710, 7
        %v712 = vsub.s32 0, %v711
        %v713 = vrot.slane %v709, %v712
        %715 = vbcast.lane.b32.xlu0 %v713, 256
        %v716 = vpop.permute.xlu0 %715
        %v717 = vlaneseq
        %v718 = vshrl.u32 %v717, 7
        %v719 = vsub.s32 1, %v718
        %v720 = vrot.slane %v709, %v719
        %722 = vbcast.lane.b32.xlu0 %v720, 256
        %v723 = vpop.permute.xlu0 %722
        %v724 = vlaneseq
        %v725 = vshrl.u32 %v724, 7
        %v726 = vsub.s32 0, %v725
        %v727 = vrot.slane %v702, %v726
        %v728 = vmul.f32 %v716, %v727
        %v729 = vmul.f32 %v723, %v727
        %v730 = vadd.f32 %v728, 0.0
        %v731 = vadd.f32 %v729, 0.0
        %733 = vrot.lane.b32.xlu0 %v335, 2
        %v734 = vpop.permute.xlu0 %733
        %v736 = vsel %vm708, 0.0, %v734
        %v737 = vlaneseq
        %v738 = vshrl.u32 %v737, 7
        %v739 = vsub.s32 0, %v738
        %v740 = vrot.slane %v736, %v739
        %742 = vbcast.lane.b32.xlu0 %v740, 256
        %v743 = vpop.permute.xlu0 %742
        %v744 = vlaneseq
        %v745 = vshrl.u32 %v744, 7
        %v746 = vsub.s32 1, %v745
        %v747 = vrot.slane %v736, %v746
        %749 = vbcast.lane.b32.xlu0 %v747, 256
        %v750 = vpop.permute.xlu0 %749
        %v751 = vlaneseq
        %v752 = vshrl.u32 %v751, 7
        %v753 = vsub.s32 5, %v752
        %v754 = vrot.slane %v702, %v753
        %v755 = vmul.f32 %v743, %v754
        %v756 = vmul.f32 %v750, %v754
        %v757 = vadd.f32 %v730, %v755
        %v758 = vadd.f32 %v731, %v756
        %759 = vrot.lane.b32.xlu0 %v334, 1
        %v760 = vpop.permute.xlu0 %759
        %vm762 = vcmask 7168
        %v763 = vsel %vm762, 0.0, %v760
        %v764 = vlaneseq
        %v765 = vshrl.u32 %v764, 7
        %v766 = vsub.s32 0, %v765
        %v767 = vrot.slane %v763, %v766
        %769 = vbcast.lane.b32.xlu0 %v767, 256
        %v770 = vpop.permute.xlu0 %769
        %v771 = vlaneseq
        %v772 = vshrl.u32 %v771, 7
        %v773 = vsub.s32 1, %v772
        %v774 = vrot.slane %v763, %v773
        %776 = vbcast.lane.b32.xlu0 %v774, 256
        %v777 = vpop.permute.xlu0 %776
        %v778 = vlaneseq
        %v779 = vshrl.u32 %v778, 7
        %v780 = vsub.s32 1, %v779
        %v781 = vrot.slane %v702, %v780
        %v782 = vmul.f32 %v770, %v781
        %v783 = vmul.f32 %v777, %v781
        %v784 = vadd.f32 %v757, %v782
        %v785 = vadd.f32 %v758, %v783
        %786 = vrot.lane.b32.xlu0 %v335, 1
        %v787 = vpop.permute.xlu0 %786
        %v789 = vsel %vm762, 0.0, %v787
        %v790 = vlaneseq
        %v791 = vshrl.u32 %v790, 7
        %v792 = vsub.s32 0, %v791
        %v793 = vrot.slane %v789, %v792
        %795 = vbcast.lane.b32.xlu0 %v793, 256
        %v796 = vpop.permute.xlu0 %795
        %v797 = vlaneseq
        %v798 = vshrl.u32 %v797, 7
        %v799 = vsub.s32 1, %v798
        %v800 = vrot.slane %v789, %v799
        %802 = vbcast.lane.b32.xlu0 %v800, 256
        %v803 = vpop.permute.xlu0 %802
        %v804 = vlaneseq
        %v805 = vshrl.u32 %v804, 7
        %v806 = vsub.s32 6, %v805
        %v807 = vrot.slane %v702, %v806
        %v808 = vmul.f32 %v796, %v807
        %v809 = vmul.f32 %v803, %v807
        %v810 = vadd.f32 %v784, %v808
        %v811 = vadd.f32 %v785, %v809
        %v812 = vlaneseq
        %v813 = vshrl.u32 %v812, 7
        %v814 = vsub.s32 0, %v813
        %v815 = vrot.slane %v334, %v814
        %817 = vbcast.lane.b32.xlu0 %v815, 256
        %v818 = vpop.permute.xlu0 %817
        %v819 = vlaneseq
        %v820 = vshrl.u32 %v819, 7
        %v821 = vsub.s32 1, %v820
        %v822 = vrot.slane %v334, %v821
        %824 = vbcast.lane.b32.xlu0 %v822, 256
        %v825 = vpop.permute.xlu0 %824
        %v826 = vlaneseq
        %v827 = vshrl.u32 %v826, 7
        %v828 = vsub.s32 2, %v827
        %v829 = vrot.slane %v702, %v828
        %v830 = vmul.f32 %v818, %v829
        %v831 = vmul.f32 %v825, %v829
        %v832 = vadd.f32 %v810, %v830
        %v833 = vadd.f32 %v811, %v831
        %v834 = vlaneseq
        %v835 = vshrl.u32 %v834, 7
        %v836 = vsub.s32 0, %v835
        %v837 = vrot.slane %v335, %v836
        %839 = vbcast.lane.b32.xlu0 %v837, 256
        %v840 = vpop.permute.xlu0 %839
        %v841 = vlaneseq
        %v842 = vshrl.u32 %v841, 7
        %v843 = vsub.s32 1, %v842
        %v844 = vrot.slane %v335, %v843
        %846 = vbcast.lane.b32.xlu0 %v844, 256
        %v847 = vpop.permute.xlu0 %846
        %v848 = vlaneseq
        %v849 = vshrl.u32 %v848, 7
        %v850 = vsub.s32 7, %v849
        %v851 = vrot.slane %v702, %v850
        %v852 = vmul.f32 %v840, %v851
        %v853 = vmul.f32 %v847, %v851
        %v854 = vadd.f32 %v832, %v852
        %v855 = vadd.f32 %v833, %v853
        %856 = vrot.lane.b32.xlu0 %v334, 127
        %v857 = vpop.permute.xlu0 %856
        %vm859 = vcmask 56320
        %v860 = vsel %vm859, %v857, 0.0
        %v861 = vlaneseq
        %v862 = vshrl.u32 %v861, 7
        %v863 = vsub.s32 0, %v862
        %v864 = vrot.slane %v860, %v863
        %866 = vbcast.lane.b32.xlu0 %v864, 256
        %v867 = vpop.permute.xlu0 %866
        %v868 = vlaneseq
        %v869 = vshrl.u32 %v868, 7
        %v870 = vsub.s32 1, %v869
        %v871 = vrot.slane %v860, %v870
        %873 = vbcast.lane.b32.xlu0 %v871, 256
        %v874 = vpop.permute.xlu0 %873
        %v875 = vlaneseq
        %v876 = vshrl.u32 %v875, 7
        %v877 = vsub.s32 3, %v876
        %v878 = vrot.slane %v702, %v877
        %v879 = vmul.f32 %v867, %v878
        %v880 = vmul.f32 %v874, %v878
        %v881 = vadd.f32 %v854, %v879
        %v882 = vadd.f32 %v855, %v880
        %883 = vrot.lane.b32.xlu0 %v335, 127
        %v884 = vpop.permute.xlu0 %883
        %v886 = vsel %vm859, %v884, 0.0
        %v887 = vlaneseq
        %v888 = vshrl.u32 %v887, 7
        %v889 = vsub.s32 0, %v888
        %v890 = vrot.slane %v886, %v889
        %892 = vbcast.lane.b32.xlu0 %v890, 256
        %v893 = vpop.permute.xlu0 %892
        %v894 = vlaneseq
        %v895 = vshrl.u32 %v894, 7
        %v896 = vsub.s32 1, %v895
        %v897 = vrot.slane %v886, %v896
        %899 = vbcast.lane.b32.xlu0 %v897, 256
        %v900 = vpop.permute.xlu0 %899
        %v901 = vlaneseq
        %v902 = vshrl.u32 %v901, 7
        %v903 = vsub.s32 0, %v902
        %v904 = vrot.slane %v703, %v903
        %v905 = vmul.f32 %v893, %v904
        %v906 = vmul.f32 %v900, %v904
        %v907 = vadd.f32 %v881, %v905
        %v908 = vadd.f32 %v882, %v906
        %909 = vrot.lane.b32.xlu0 %v334, 126
        %v910 = vpop.permute.xlu0 %909
        %vm912 = vcmask 48128
        %v913 = vsel %vm912, %v910, 0.0
        %v914 = vlaneseq
        %v915 = vshrl.u32 %v914, 7
        %v916 = vsub.s32 0, %v915
        %v917 = vrot.slane %v913, %v916
        %919 = vbcast.lane.b32.xlu0 %v917, 256
        %v920 = vpop.permute.xlu0 %919
        %v921 = vlaneseq
        %v922 = vshrl.u32 %v921, 7
        %v923 = vsub.s32 1, %v922
        %v924 = vrot.slane %v913, %v923
        %926 = vbcast.lane.b32.xlu0 %v924, 256
        %v927 = vpop.permute.xlu0 %926
        %v928 = vlaneseq
        %v929 = vshrl.u32 %v928, 7
        %v930 = vsub.s32 4, %v929
        %v931 = vrot.slane %v702, %v930
        %v932 = vmul.f32 %v920, %v931
        %v933 = vmul.f32 %v927, %v931
        %v934 = vadd.f32 %v907, %v932
        %v935 = vadd.f32 %v908, %v933
        %936 = vrot.lane.b32.xlu0 %v335, 126
        %v937 = vpop.permute.xlu0 %936
        %v939 = vsel %vm912, %v937, 0.0
        %v940 = vlaneseq
        %v941 = vshrl.u32 %v940, 7
        %v942 = vsub.s32 0, %v941
        %v943 = vrot.slane %v939, %v942
        %945 = vbcast.lane.b32.xlu0 %v943, 256
        %v946 = vpop.permute.xlu0 %945
        %v947 = vlaneseq
        %v948 = vshrl.u32 %v947, 7
        %v949 = vsub.s32 1, %v948
        %v950 = vrot.slane %v939, %v949
        %952 = vbcast.lane.b32.xlu0 %v950, 256
        %v953 = vpop.permute.xlu0 %952
        %v954 = vlaneseq
        %v955 = vshrl.u32 %v954, 7
        %v956 = vsub.s32 1, %v955
        %v957 = vrot.slane %v703, %v956
        %v958 = vmul.f32 %v946, %v957
        %v959 = vmul.f32 %v953, %v957
        %v960 = vadd.f32 %v934, %v958
        %v961 = vadd.f32 %v935, %v959
        %v964 = vunpack.c.l.s4 1966171168
        %v965 = vunpack.c.0.s8 %v964
        %v966 = vlaneseq
        %v967 = vshrl.u32 %v966, 7
        %v968 = vsub.s32 %v965, %v967
        %v969 = vrot.slane %v699, %v968
        %v970 = vcombine.high %v969, %v969
        %v972 = vunpack.c.l.s4 1966171168
        %v973 = vunpack.c.0.s8 %v972
        %v974 = vlaneseq
        %v975 = vshrl.u32 %v974, 7
        %v976 = vsub.s32 %v973, %v975
        %v977 = vrot.slane %v969, %v976
        %v979 = vunpack.c.l.s4 1966171168
        %v980 = vunpack.c.0.s8 %v979
        %v981 = vlaneseq
        %v982 = vshrl.u32 %v981, 7
        %v983 = vsub.s32 %v980, %v982
        %v984 = vrot.slane %v970, %v983
        %v985 = vlaneseq
        %v986 = vshrl.u32 %v985, 7
        %v987 = vsub.s32 0, %v986
        %v988 = vrot.slane %v977, %v987
        %v989 = vlaneseq
        %v990 = vshrl.u32 %v989, 7
        %v991 = vsub.s32 0, %v990
        %v992 = vrot.slane %v984, %v991
        %v995 = vadd.f32 %v988, %v960
        %v996 = vadd.f32 %v992, %v961
        %v997 = vld [vmem:[%s2] sm:$0xff]
        %v998 = vld [vmem:[%s2 + $0x8] sm:$0xff]
        %v999 = vadd.f32 %v995, %v997
        %v1000 = vadd.f32 %v996, %v998
        %v1001 = vtanh.pop %v999
        %v1002 = vtanh.pop %v1000
        %v1003 = vld [vmem:[#allocation9 + $0xb0] sm:$0x1]
        %v1004 = vlaneseq
        %v1005 = vshrl.u32 %v1004, 7
        %v1006 = vsub.s32 0, %v1005
        %v1007 = vrot.slane %v1003, %v1006
        %v1008 = vmul.f32 %v1001, %v1007
        %v1009 = vmul.f32 %v1002, %v1007
        %vm1010 = vcmask 130048
        %v1011 = vsel %vm1010, %v1008, 0.0
        %1012 = vadd.xlane.f32.xlu0 %v1011
        %v1013 = vpop.xlane.xlu0 %1012
        %v1014 = vsel %vm1010, %v1009, 0.0
        %1015 = vadd.xlane.f32.xlu0 %v1014
        %v1016 = vpop.xlane.xlu0 %1015
        %vm1017 = vcmp.gt.f32.partialorder %v336, 0.5
        %v1021 = vunpack.c.l.s4 269488144
        %v1022 = vunpack.c.0.s8 %v1021
        %v1023 = vlaneseq
        %v1024 = vshrl.u32 %v1023, 7
        %v1025 = vsub.s32 %v1022, %v1024
        %v1026 = vrot.slane %v1013, %v1025
        %v1028 = vunpack.c.l.s4 842150450
        %v1029 = vunpack.c.0.s8 %v1028
        %v1030 = vlaneseq
        %v1031 = vshrl.u32 %v1030, 7
        %v1032 = vsub.s32 %v1029, %v1031
        %v1033 = vrot.slane %v1013, %v1032
        %v1035 = vunpack.c.l.s4 1414812756
        %v1036 = vunpack.c.0.s8 %v1035
        %v1037 = vlaneseq
        %v1038 = vshrl.u32 %v1037, 7
        %v1039 = vsub.s32 %v1036, %v1038
        %v1040 = vrot.slane %v1013, %v1039
        %v1042 = vunpack.c.l.s4 1987475062
        %v1043 = vunpack.c.0.s8 %v1042
        %v1044 = vlaneseq
        %v1045 = vshrl.u32 %v1044, 7
        %v1046 = vsub.s32 %v1043, %v1045
        %v1047 = vrot.slane %v1013, %v1046
        %v1049 = vunpack.c.l.s4 269488144
        %v1050 = vunpack.c.0.s8 %v1049
        %v1051 = vlaneseq
        %v1052 = vshrl.u32 %v1051, 7
        %v1053 = vsub.s32 %v1050, %v1052
        %v1054 = vrot.slane %v1016, %v1053
        %v1056 = vunpack.c.l.s4 842150450
        %v1057 = vunpack.c.0.s8 %v1056
        %v1058 = vlaneseq
        %v1059 = vshrl.u32 %v1058, 7
        %v1060 = vsub.s32 %v1057, %v1059
        %v1061 = vrot.slane %v1016, %v1060
        %v1063 = vunpack.c.l.s4 1414812756
        %v1064 = vunpack.c.0.s8 %v1063
        %v1065 = vlaneseq
        %v1066 = vshrl.u32 %v1065, 7
        %v1067 = vsub.s32 %v1064, %v1066
        %v1068 = vrot.slane %v1016, %v1067
        %v1070 = vunpack.c.l.s4 1987475062
        %v1071 = vunpack.c.0.s8 %v1070
        %v1072 = vlaneseq
        %v1073 = vshrl.u32 %v1072, 7
        %v1074 = vsub.s32 %v1071, %v1073
        %v1075 = vrot.slane %v1016, %v1074
        %v1076 = vcombine.low %v1026, %v1033
        %v1077 = vcombine.low %v1040, %v1047
        %v1079 = vunpack.c.l.s4 1983009808
        %v1080 = vunpack.c.0.s8 %v1079
        %v1081 = vlaneseq
        %v1082 = vshrl.u32 %v1081, 7
        %v1083 = vsub.s32 %v1080, %v1082
        %v1084 = vrot.slane %v1076, %v1083
        %v1086 = vunpack.c.l.s4 1983009808
        %v1087 = vunpack.c.0.s8 %v1086
        %v1088 = vlaneseq
        %v1089 = vshrl.u32 %v1088, 7
        %v1090 = vsub.s32 %v1087, %v1089
        %v1091 = vrot.slane %v1077, %v1090
        %v1092 = vcombine.low %v1084, %v1091
        %v1093 = vcombine.low %v1054, %v1061
        %v1094 = vcombine.low %v1068, %v1075
        %v1096 = vunpack.c.l.s4 1983009808
        %v1097 = vunpack.c.0.s8 %v1096
        %v1098 = vlaneseq
        %v1099 = vshrl.u32 %v1098, 7
        %v1100 = vsub.s32 %v1097, %v1099
        %v1101 = vrot.slane %v1093, %v1100
        %v1103 = vunpack.c.l.s4 1983009808
        %v1104 = vunpack.c.0.s8 %v1103
        %v1105 = vlaneseq
        %v1106 = vshrl.u32 %v1105, 7
        %v1107 = vsub.s32 %v1104, %v1106
        %v1108 = vrot.slane %v1094, %v1107
        %v1109 = vcombine.low %v1101, %v1108
        %1110 = vset.pattern.permute.xlu0 0
        %1111 = vperm.xlu0 %1110, %v1092
        %v1112 = vpop.permute.xlu0 %1111
        %1113 = vset.pattern.permute.xlu0 0
        %1114 = vperm.xlu0 %1113, %v1109
        %v1115 = vpop.permute.xlu0 %1114
        %v1116 = vlaneseq
        %v1117 = vand.u32 %v1116, 127
        %v1118 = vadd.s32 %v1117, 4294967256
        %v1119 = vlaneseq
        %v1120 = vshrl.u32 %v1119, 7
        %v1121 = vsub.s32 %v1118, %v1120
        %v1122 = vrot.slane %v1112, %v1121
        %v1123 = vlaneseq
        %v1124 = vshrl.u32 %v1123, 7
        %v1125 = vsub.s32 %v1118, %v1124
        %v1126 = vrot.slane %v1115, %v1125
        %vm1127 = vcmask 1041409
        %v1128 = vsel %vm1127, %v1126, %v1122
        %v1130 = vunpack.c.l.s4 1983009808
        %v1131 = vunpack.c.0.s8 %v1130
        %v1132 = vlaneseq
        %v1133 = vshrl.u32 %v1132, 7
        %v1134 = vsub.s32 %v1131, %v1133
        %v1135 = vrot.slane %v1128, %v1134
        %v1137 = vsel %vm1017, -1e+30, %v1135
        %vm1138 = vcmask 386368
        %v1139 = vsel %vm1138, %v1137, -inf
        %1140 = vmax.xlane.f32.xlu0 %v1139
        %v1141 = vpop.xlane.xlu0 %1140
        %v1142 = vsub.f32 %v1137, %v1141
        %v1143 = vmul.f32 %v1142, 1.442695
        %v1144 = vpow.pop %v1143
        %v1147 = vunpack.c.l.s4 1983009808
        %v1148 = vunpack.c.0.s8 %v1147
        %v1149 = vlaneseq
        %v1150 = vshrl.u32 %v1149, 7
        %v1151 = vsub.s32 %v1148, %v1150
        %v1152 = vrot.slane %v1144, %v1151
        %1153 = vrot.lane.b32.xlu0 %v1152, 88
        %v1154 = vpop.permute.xlu0 %1153
        %vm1156 = vcmask 58368
        %v1157 = vsel %vm1156, %v1154, 0.0
        %1158 = vadd.xlane.f32.xlu0 %v1157
        %v1159 = vpop.xlane.xlu0 %1158
        %v1160 = vrcp.pop %v1159
        %v1161 = vmul.f32 %v1144, %v1160
        %v1164 = vunpack.c.l.s4 1983009808
        %v1165 = vunpack.c.0.s8 %v1164
        %v1166 = vlaneseq
        %v1167 = vshrl.u32 %v1166, 7
        %v1168 = vsub.s32 %v1165, %v1167
        %v1169 = vrot.slane %v1161, %v1168
        %1170 = vrot.lane.b32.xlu0 %v1169, 88
        %v1171 = vpop.permute.xlu0 %1170
        %v1173 = vadd.f32 %v335, %v1171
        %v1175 = vunpack.c.l.s4 1966171168
        %v1176 = vunpack.c.0.s8 %v1175
        %v1177 = vlaneseq
        %v1178 = vshrl.u32 %v1177, 7
        %v1179 = vsub.s32 %v1176, %v1178
        %v1180 = vrot.slane %v1161, %v1179
        %v1181 = vcombine.high %v1180, %v1180
        %v1182 = vld [vmem:[%s1] sm:$0xff]
        %v1183 = vld [vmem:[%s1 + $0x8] sm:$0xff]
        %v1184 = vld [vmem:[%s1 + $0x10] sm:$0xff]
        %v1185 = vld [vmem:[%s1 + $0x18] sm:$0xff]
        %v1186 = vlaneseq
        %v1187 = vshrl.u32 %v1186, 7
        %v1188 = vsub.s32 0, %v1187
        %v1189 = vrot.slane %v1180, %v1188
        %v1190 = vlaneseq
        %v1191 = vshrl.u32 %v1190, 7
        %v1192 = vsub.s32 0, %v1191
        %v1193 = vrot.slane %v1181, %v1192
        %1200 = vrot.lane.b32.xlu0 %v1182, 40
        %v1201 = vpop.permute.xlu0 %1200
        %1202 = vrot.lane.b32.xlu0 %v1183, 40
        %v1203 = vpop.permute.xlu0 %1202
        %1204 = vrot.lane.b32.xlu0 %v1184, 40
        %v1205 = vpop.permute.xlu0 %1204
        %1206 = vrot.lane.b32.xlu0 %v1185, 40
        %v1207 = vpop.permute.xlu0 %1206
        %v1212 = vmul.f32 %v1189, %v1201
        %v1213 = vmul.f32 %v1189, %v1203
        %v1214 = vmul.f32 %v1193, %v1205
        %v1215 = vmul.f32 %v1193, %v1207
        %1220 = vrot.lane.b32.xlu0 %v1212, 88
        %v1221 = vpop.permute.xlu0 %1220
        %1222 = vrot.lane.b32.xlu0 %v1213, 88
        %v1223 = vpop.permute.xlu0 %1222
        %1224 = vrot.lane.b32.xlu0 %v1214, 88
        %v1225 = vpop.permute.xlu0 %1224
        %1226 = vrot.lane.b32.xlu0 %v1215, 88
        %v1227 = vpop.permute.xlu0 %1226
        %v1232 = vsel %vm339, %v1221, 0.0
        %1233 = vadd.xlane.f32.xlu0 %v1232
        %v1234 = vpop.xlane.xlu0 %1233
        %v1235 = vsel %vm339, %v1223, 0.0
        %1236 = vadd.xlane.f32.xlu0 %v1235
        %v1237 = vpop.xlane.xlu0 %1236
        %v1238 = vsel %vm339, %v1225, 0.0
        %1239 = vadd.xlane.f32.xlu0 %v1238
        %v1240 = vpop.xlane.xlu0 %1239
        %v1241 = vsel %vm339, %v1227, 0.0
        %1242 = vadd.xlane.f32.xlu0 %v1241
        %v1243 = vpop.xlane.xlu0 %1242
        %v1249 = vadd.s32 %v1117, 4294967264
        %v1250 = vlaneseq
        %v1251 = vshrl.u32 %v1250, 7
        %v1252 = vsub.s32 %v1249, %v1251
        %v1253 = vrot.slane %v1234, %v1252
        %v1254 = vlaneseq
        %v1255 = vshrl.u32 %v1254, 7
        %v1256 = vsub.s32 %v1118, %v1255
        %v1257 = vrot.slane %v1237, %v1256
        %vm1258 = vcmask 392512
        %v1259 = vsel %vm1258, %v1257, %v1253
        %v1260 = vlaneseq
        %v1261 = vshrl.u32 %v1260, 7
        %v1262 = vsub.s32 %v1249, %v1261
        %v1263 = vrot.slane %v1240, %v1262
        %v1264 = vlaneseq
        %v1265 = vshrl.u32 %v1264, 7
        %v1266 = vsub.s32 %v1118, %v1265
        %v1267 = vrot.slane %v1243, %v1266
        %v1268 = vsel %vm1258, %v1267, %v1263
        %v1269 = vsel %vm1127, %v1268, %v1259
        %1272 = vrot.lane.b32.xlu0 %v332, 48
        %v1273 = vpop.permute.xlu0 %1272
        %v1275 = vsel %vm420, %v629, %v1269
        %vm1276 = vcmask 392192
        %v1277 = vsel %vm1276, %v1275, %v1273
        %v1278 = vld [vmem:[#allocation9 + $0xb8] sm:$0xff]
        %v1279 = vld [vmem:[#allocation9 + $0xc0] sm:$0xff]
        %v1280 = vld [vmem:[#allocation9 + $0xc8] sm:$0xff]
        %v1281 = vld [vmem:[#allocation9 + $0xd0] sm:$0xff]
        %v1282 = vld [vmem:[#allocation9 + $0xd8] sm:$0xff]
        %v1283 = vld [vmem:[#allocation9 + $0xe0] sm:$0xff]
        %v1284 = vld [vmem:[#allocation9 + $0xe8] sm:$0xff]
        %v1285 = vld [vmem:[#allocation9 + $0xf0] sm:$0xff]
        %v1286 = vld [vmem:[#allocation9 + $0xf8] sm:$0xff]
        %v1287 = vld [vmem:[#allocation9 + $0x100] sm:$0xff]
        %v1288 = vld [vmem:[#allocation9 + $0x108] sm:$0x1]
        %v1289 = vlaneseq
        %v1290 = vshrl.u32 %v1289, 7
        %v1291 = vsub.s32 0, %v1290
        %v1292 = vrot.slane %v1288, %v1291
        %v1294 = vsel %vm521, %v1277, 0
        %1296 = vmatprep.subr.mxu0 0.0
        %1297 = vmatpush1.msra.mxu0 0.0
        %1298 = vmatprep.subr.mxu0 0.0
        %1299 = vmatpush1.msra.mxu0 0.0
        %1300 = vmatprep.subr.mxu0 0.0
        %1301 = vmatpush1.msra.mxu0 0.0
        %1302 = vmatprep.subr.mxu0 0.0
        %1303 = vmatpush1.msra.mxu0 0.0
        %1304 = vmatprep.subr.mxu0 0.0
        %1305 = vmatpush1.msra.mxu0 0.0
        %1306 = vmatprep.subr.mxu0 0.0
        %1307 = vmatpush1.msra.mxu0 0.0
        %1308 = vmatprep.subr.mxu0 0.0
        %1309 = vmatpush1.msra.mxu0 %v1287
        %1310 = vmatprep.subr.mxu0 0.0
        %1311 = vmatpush1.msra.mxu0 %v1286
        %1312 = vmatprep.subr.mxu0 0.0
        %1313 = vmatpush1.msra.mxu0 %v1285
        %1314 = vmatprep.subr.mxu0 0.0
        %1315 = vmatpush1.msra.mxu0 %v1284
        %1316 = vmatprep.subr.mxu0 0.0
        %1317 = vmatpush1.msra.mxu0 %v1283
        %1318 = vmatprep.subr.mxu0 0.0
        %1319 = vmatpush1.msra.mxu0 %v1282
        %1320 = vmatprep.subr.mxu0 0.0
        %1321 = vmatpush1.msra.mxu0 %v1281
        %1322 = vmatprep.subr.mxu0 0.0
        %1323 = vmatpush1.msra.mxu0 %v1280
        %1324 = vmatprep.subr.mxu0 0.0
        %1325 = vmatpush1.msra.mxu0 %v1279
        %1326 = vmatprep.subr.mxu0 0.0
        %1327 = vmatpush1.msra.mxu0 %v1278
        %1328 = vmatprep.subr.mxu0 0.0
        %1329 = vmatpush2.msra.mxu0 0.0
        %1330 = vmatprep.subr.mxu0 0.0
        %1331 = vmatpush2.msra.mxu0 0.0
        %1332 = vmatprep.subr.mxu0 0.0
        %1333 = vmatpush2.msra.mxu0 0.0
        %1334 = vmatprep.subr.mxu0 0.0
        %1335 = vmatpush2.msra.mxu0 0.0
        %1336 = vmatprep.subr.mxu0 0.0
        %1337 = vmatpush2.msra.mxu0 0.0
        %1338 = vmatprep.subr.mxu0 0.0
        %1339 = vmatpush2.msra.mxu0 0.0
        %1340 = vmatprep.subr.mxu0 0.0
        %1341 = vmatpush2.msra.mxu0 0.0
        %1342 = vmatprep.subr.mxu0 0.0
        %1343 = vmatpush2.msra.mxu0 0.0
        %1344 = vmatprep.subr.mxu0 0.0
        %1345 = vmatpush2.msra.mxu0 0.0
        %1346 = vmatprep.subr.mxu0 0.0
        %1347 = vmatpush2.msra.mxu0 0.0
        %1348 = vmatprep.subr.mxu0 0.0
        %1349 = vmatpush2.msra.mxu0 0.0
        %1350 = vmatprep.subr.mxu0 0.0
        %1351 = vmatpush2.msra.mxu0 0.0
        %1352 = vmatprep.subr.mxu0 0.0
        %1353 = vmatpush2.msra.mxu0 0.0
        %1354 = vmatprep.subr.mxu0 0.0
        %1355 = vmatpush2.msra.mxu0 0.0
        %1356 = vmatprep.subr.mxu0 0.0
        %1357 = vmatpush2.msra.mxu0 0.0
        %1358 = vmatprep.subr.mxu0 0.0
        %1359 = vmatpush2.msra.mxu0 0.0
        %1360 = vmatprep.mubr.f32.mxu0 0.0
        %1361 = vmatmul.mubr.f32.gmra.mxu0 %v1294
        %v1362 = vpop.f32.mrf.mxu0
        %v1363 = vadd.f32 %v1292, %v1362
        %v1364 = vpop.f32.mrf.mxu0
        %1365 = vdwg.mxu0
        %v1366 = vxor.u32 %v1363, 2147483648
        %v1367 = vmul.f32 %v1366, 1.442695
        %v1368 = vpow.pop %v1367
        %v1369 = vadd.f32 %v1368, 1.0
        %v1370 = vrcp.pop %v1369
        %v1371 = vmul.f32 1.0, %v1370
        %v1372 = vtanh.pop %v1363
        %1374 = vrot.lane.b32.xlu0 %v333, 32
        %v1375 = vpop.permute.xlu0 %1374
        %v1377 = vmul.f32 %v1371, %v1375
        %1379 = vrot.lane.b32.xlu0 %v1372, 64
        %v1380 = vpop.permute.xlu0 %1379
        %v1382 = vmul.f32 %v1371, %v1380
        %1384 = vrot.lane.b32.xlu0 %v1382, 32
        %v1385 = vpop.permute.xlu0 %1384
        %v1387 = vadd.f32 %v1377, %v1385
        %v1388 = vtanh.pop %v1387
        %1390 = vrot.lane.b32.xlu0 %v1388, 64
        %v1391 = vpop.permute.xlu0 %1390
        %v1393 = vmul.f32 %v1371, %v1391
        %1395 = vrot.lane.b32.xlu0 %v1393, 32
        %v1396 = vpop.permute.xlu0 %1395
        %v1398 = vsel %vm420, %v1396, %v1269
        %v1399 = vld [vmem:[#allocation9 + $0x110] sm:$0xff]
        %v1400 = vld [vmem:[#allocation9 + $0x118] sm:$0xff]
        %v1401 = vld [vmem:[#allocation9 + $0x120] sm:$0xff]
        %v1402 = vld [vmem:[#allocation9 + $0x128] sm:$0xff]
        %v1403 = vld [vmem:[#allocation9 + $0x130] sm:$0xff]
        %v1404 = vld [vmem:[#allocation9 + $0x138] sm:$0xff]
        %v1405 = vld [vmem:[#allocation9 + $0x140] sm:$0x1]
        %v1406 = vlaneseq
        %v1407 = vshrl.u32 %v1406, 7
        %v1408 = vsub.s32 0, %v1407
        %v1409 = vrot.slane %v1405, %v1408
        %v1411 = vsel %vm1276, %v1398, 0
        %1413 = vmatprep.subr.mxu0 0.0
        %1414 = vmatpush1.msra.mxu0 0.0
        %1415 = vmatprep.subr.mxu0 0.0
        %1416 = vmatpush1.msra.mxu0 0.0
        %1417 = vmatprep.subr.mxu0 0.0
        %1418 = vmatpush1.msra.mxu0 0.0
        %1419 = vmatprep.subr.mxu0 0.0
        %1420 = vmatpush1.msra.mxu0 0.0
        %1421 = vmatprep.subr.mxu0 0.0
        %1422 = vmatpush1.msra.mxu0 0.0
        %1423 = vmatprep.subr.mxu0 0.0
        %1424 = vmatpush1.msra.mxu0 0.0
        %1425 = vmatprep.subr.mxu0 0.0
        %1426 = vmatpush1.msra.mxu0 0.0
        %1427 = vmatprep.subr.mxu0 0.0
        %1428 = vmatpush1.msra.mxu0 0.0
        %1429 = vmatprep.subr.mxu0 0.0
        %1430 = vmatpush1.msra.mxu0 0.0
        %1431 = vmatprep.subr.mxu0 0.0
        %1432 = vmatpush1.msra.mxu0 0.0
        %1433 = vmatprep.subr.mxu0 0.0
        %1434 = vmatpush1.msra.mxu0 %v1404
        %1435 = vmatprep.subr.mxu0 0.0
        %1436 = vmatpush1.msra.mxu0 %v1403
        %1437 = vmatprep.subr.mxu0 0.0
        %1438 = vmatpush1.msra.mxu0 %v1402
        %1439 = vmatprep.subr.mxu0 0.0
        %1440 = vmatpush1.msra.mxu0 %v1401
        %1441 = vmatprep.subr.mxu0 0.0
        %1442 = vmatpush1.msra.mxu0 %v1400
        %1443 = vmatprep.subr.mxu0 0.0
        %1444 = vmatpush1.msra.mxu0 %v1399
        %1445 = vmatprep.subr.mxu0 0.0
        %1446 = vmatpush2.msra.mxu0 0.0
        %1447 = vmatprep.subr.mxu0 0.0
        %1448 = vmatpush2.msra.mxu0 0.0
        %1449 = vmatprep.subr.mxu0 0.0
        %1450 = vmatpush2.msra.mxu0 0.0
        %1451 = vmatprep.subr.mxu0 0.0
        %1452 = vmatpush2.msra.mxu0 0.0
        %1453 = vmatprep.subr.mxu0 0.0
        %1454 = vmatpush2.msra.mxu0 0.0
        %1455 = vmatprep.subr.mxu0 0.0
        %1456 = vmatpush2.msra.mxu0 0.0
        %1457 = vmatprep.subr.mxu0 0.0
        %1458 = vmatpush2.msra.mxu0 0.0
        %1459 = vmatprep.subr.mxu0 0.0
        %1460 = vmatpush2.msra.mxu0 0.0
        %1461 = vmatprep.subr.mxu0 0.0
        %1462 = vmatpush2.msra.mxu0 0.0
        %1463 = vmatprep.subr.mxu0 0.0
        %1464 = vmatpush2.msra.mxu0 0.0
        %1465 = vmatprep.subr.mxu0 0.0
        %1466 = vmatpush2.msra.mxu0 0.0
        %1467 = vmatprep.subr.mxu0 0.0
        %1468 = vmatpush2.msra.mxu0 0.0
        %1469 = vmatprep.subr.mxu0 0.0
        %1470 = vmatpush2.msra.mxu0 0.0
        %1471 = vmatprep.subr.mxu0 0.0
        %1472 = vmatpush2.msra.mxu0 0.0
        %1473 = vmatprep.subr.mxu0 0.0
        %1474 = vmatpush2.msra.mxu0 0.0
        %1475 = vmatprep.subr.mxu0 0.0
        %1476 = vmatpush2.msra.mxu0 0.0
        %1477 = vmatprep.mubr.f32.mxu0 0.0
        %1478 = vmatmul.mubr.f32.gmra.mxu0 %v1411
        %v1479 = vpop.f32.mrf.mxu0
        %v1480 = vadd.f32 %v1409, %v1479
        %v1481 = vpop.f32.mrf.mxu0
        %1482 = vdwg.mxu0
        %1483 = vst.msk [vmem:[#allocation2] sm:$0x3] %vm1156, %v1480
        %v1484 = vlaneseq
        %v1485 = vshrl.u32 %v1484, 7
        %v1486 = vsub.s32 %v1117, %v1485
        %v1487 = vrot.slane %v1234, %v1486
        %v1488 = vadd.s32 %v1117, 4294967288
        %v1489 = vlaneseq
        %v1490 = vshrl.u32 %v1489, 7
        %v1491 = vsub.s32 %v1488, %v1490
        %v1492 = vrot.slane %v1237, %v1491
        %vm1493 = vcmask 130112
        %v1494 = vsel %vm1493, %v1492, %v1487
        %v1495 = vlaneseq
        %v1496 = vshrl.u32 %v1495, 7
        %v1497 = vsub.s32 %v1117, %v1496
        %v1498 = vrot.slane %v1240, %v1497
        %v1499 = vlaneseq
        %v1500 = vshrl.u32 %v1499, 7
        %v1501 = vsub.s32 %v1488, %v1500
        %v1502 = vrot.slane %v1243, %v1501
        %v1503 = vsel %vm1493, %v1502, %v1498
        %v1504 = vsel %vm1127, %v1503, %v1494
        %1506 = vrot.lane.b32.xlu0 %v622, 48
        %v1507 = vpop.permute.xlu0 %1506
        %v1509 = vsel %vm1010, %v1504, %v1507
        %vm1510 = vcmask 386048
        %1511 = vst.msk [vmem:[#allocation3] sm:$0x3] %vm1510, %v1509
        %1513 = vrot.lane.b32.xlu0 %v616, 96
        %v1514 = vpop.permute.xlu0 %1513
        %vm1516 = vcmask 254976
        %1517 = vst.msk [vmem:[#allocation4] sm:$0x3] %vm1516, %v1514
        %1518 = vst.msk [vmem:[#allocation5] sm:$0x3] %vm1516, %v1396
        %1520 = vrot.lane.b32.xlu0 %v1387, 96
        %v1521 = vpop.permute.xlu0 %1520
        %1523 = vst.msk [vmem:[#allocation6] sm:$0x3] %vm1516, %v1521
        %1524 = vst.msk [vmem:[#allocation7] sm:$0x3] %vm1156, %v1171
        %1525 = vst.msk [vmem:[#allocation8] sm:$0x3] %vm1156, %v1173
        %1526 = vrot.lane.b32.xlu0 %v622, 41
        %v1527 = vpop.permute.xlu0 %1526
        %1529 = vrot.lane.b32.xlu0 %v616, 9
        %v1530 = vpop.permute.xlu0 %1529
        %1532 = vrot.lane.b32.xlu0 %v1393, 105
        %v1533 = vpop.permute.xlu0 %1532
        %1535 = vrot.lane.b32.xlu0 %v1387, 73
        %v1536 = vpop.permute.xlu0 %1535
        %1538 = vrot.lane.b32.xlu0 %v1169, 97
        %v1539 = vpop.permute.xlu0 %1538
        %1542 = vrot.lane.b32.xlu0 %v1173, 17
        %v1543 = vpop.permute.xlu0 %1542
        %v1545 = vadd.s32 %v1117, 4294967271
        %v1546 = vlaneseq
        %v1547 = vshrl.u32 %v1546, 7
        %v1548 = vsub.s32 %v1545, %v1547
        %v1549 = vrot.slane %v1234, %v1548
        %v1550 = vadd.s32 %v1117, 4294967263
        %v1551 = vlaneseq
        %v1552 = vshrl.u32 %v1551, 7
        %v1553 = vsub.s32 %v1550, %v1552
        %v1554 = vrot.slane %v1237, %v1553
        %vm1555 = vcmask 335112
        %v1556 = vsel %vm1555, %v1554, %v1549
        %v1557 = vlaneseq
        %v1558 = vshrl.u32 %v1557, 7
        %v1559 = vsub.s32 %v1545, %v1558
        %v1560 = vrot.slane %v1240, %v1559
        %v1561 = vlaneseq
        %v1562 = vshrl.u32 %v1561, 7
        %v1563 = vsub.s32 %v1550, %v1562
        %v1564 = vrot.slane %v1243, %v1563
        %v1565 = vsel %vm1555, %v1564, %v1560
        %v1566 = vsel %vm1127, %v1565, %v1556
        %vm1568 = vcmask 72704
        %v1569 = vsel %vm1568, %v1480, %v1527
        %vm1570 = vcmask 334848
        %v1571 = vsel %vm1570, %v1569, %v1530
        %vm1572 = vcmask 596992
        %v1573 = vsel %vm1572, %v1571, %v1533
        %vm1574 = vcmask 859136
        %v1575 = vsel %vm1574, %v1573, %v1536
        %v1576 = vsel %vm1568, %v1536, %v1539
        %vm1577 = vcmask 138240
        %v1578 = vsel %vm1577, %v1576, %v1543
        %vm1579 = vcmask 203776
        %v1580 = vsel %vm1579, %v1578, %v1566
        %v1581 = vsel %vm1570, %v1580, 0.0
        %v1584 = vcombine.low %v1575, %v1581
        %v1586 = vunpack.c.l.s4 1983009808
        %v1587 = vunpack.c.0.s8 %v1586
        %v1588 = vlaneseq
        %v1589 = vshrl.u32 %v1588, 7
        %v1590 = vsub.s32 %v1587, %v1589
        %v1591 = vrot.slane %v1584, %v1590
        %1593 = vst [vmem:[%s236] sm:$0xf] %v1591
        %p1594 = scmp.lt.s32.totalorder %s17, 3
        %s1595 = scalar_select %p1594, %s17, 3
        %s1596 = smul.addr %s1595, 2
        %s1597 = smul.addr %s1596, 2
        %s1598 = scalar_lea.vmem %s5, %s1597
        // Predicated region
        $region49: #{decode_loop.1} parent=39 // pred_check
          %p1599 = pneg %p145
        $region50: #{decode_loop.1} parent=39 // pred_check_branch
          %1601 = sbr.rel (%p1599) target = $region52
        $region51: #{decode_loop.1} parent=39 // pred_region
          _
        $region52: #{decode_loop.1} parent=39 // pred_fallthru
          _
      $region40: #{decode_loop.1} parent=5 // pred_fallthru
        _
      %p1602 = scmp.le.s32.totalorder 2, %s12
      // Predicated region
      $region53: #{decode_loop.1} parent=5 // pred_check
        %p1603 = pneg %p1602
      $region54: #{decode_loop.1} parent=5 // pred_check_branch
        %1605 = sbr.rel (%p1603) target = $region56
      $region55: #{decode_loop.1} parent=5 // pred_region
        %s1606 = ssub.s32 %s12, 2
        // Predicated region
        $region57: #{decode_loop.1} parent=55 // pred_check
          %p1607 = pneg %p151
        $region58: #{decode_loop.1} parent=55 // pred_check_branch
          %1609 = sbr.rel (%p1607) target = $region60
        $region59: #{decode_loop.1} parent=55 // pred_region
          %p1610 = scmp.lt.s32.totalorder %s18, 3
          %s1611 = scalar_select %p1610, %s18, 3
          %s1612 = smul.addr %s1611, 2
          %s1613 = smul.addr %s1612, 2
          %s1614 = scalar_lea.vmem %s5, %s1613
        $region60: #{decode_loop.1} parent=55 // pred_fallthru
          _
      $region56: #{decode_loop.1} parent=5 // pred_fallthru
        _
    $region6: #{decode_loop.1} parent=1 // loop_footer
      %s16 = sadd.s32 1, %s12
    $region7: #{decode_loop.1} parent=1 // loop_footer_branch
      %11 = sbr.rel target = $region3
    $region8: #{decode_loop.1} parent=1 // loop_exit
      _
    %1615 = vsyncpa [#allocation10], 1
    %s1616 = scalar_lea.sflag [#allocation10], 1
    %1617 = vsyncpa %s1616, 1

</llo_original>
